<compile_context>
chip_gen: v6e
topology: v6e:2x2x1
jax: 0.10.0
libtpu: 0.0.40
codegen_flags: <defaults>
</compile_context>

<pallas_src>
import jax
import jax.numpy as jnp
from jax.experimental import pallas as pl
from jax.experimental.pallas import tpu as pltpu

LANE = 128                 # TPU lane width; feature dims padded to multiples of this.
VMEM_BUDGET = 48 << 20     # conservative budget so the fused design fits v7x (64 MiB VMEM).


def _round_up(x, m):
    return ((x + m - 1) // m) * m


def parse_cfg(cfg, in_dim, out_dim):
    """Replicates MakeMLP's layer construction. Returns (layer_seq, linear_dims)."""
    layer_seq = []
    linear_dims = []
    cur = in_dim
    for i in cfg:
        if isinstance(i, int):
            layer_seq.append("linear")
            linear_dims.append((cur, i))
            cur = i
        else:
            layer_seq.append("gelu")
    layer_seq.append("linear")
    linear_dims.append((cur, out_dim))
    return layer_seq, linear_dims


def prepare_params(weights, biases, in_dim, *, compute_dtype=jnp.bfloat16):
    """One-time (hoisted) lane-padding + compute-dtype cast of all parameters.

    weights[i]: (fan_in, fan_out) [already transposed from PyTorch's (out, in)],
    biases[i]: (1, fan_out).  Zero padding is semantics-preserving
    (0-activations * anything = 0, GELU(0) = 0, bias padded with 0).
    Call once at init and reuse the result across forward calls.
    """
    in_dim_p = _round_up(in_dim, LANE)
    w_p, b_p = [], []
    prev_p = in_dim_p
    for w, b in zip(weights, biases):
        fi, fo = w.shape
        fo_p = _round_up(fo, LANE)
        wp = jnp.zeros((prev_p, fo_p), compute_dtype).at[:fi, :fo].set(
            w.astype(compute_dtype))
        bp = jnp.zeros((1, fo_p), jnp.float32).at[:, :fo].set(
            b.astype(jnp.float32))
        w_p.append(wp)
        b_p.append(bp)
        prev_p = fo_p
    return w_p, b_p


def make_mlp_kernel(layer_seq, n_linear, compute_dtype, gelu_approximate, gelu_dtype):
    """Fused kernel body: chain of (bf16 matmul -> f32 acc -> bias -> GELU)."""

    def kernel(x_ref, *refs):
        # refs = (w0, b0, w1, b1, ..., w_{L-1}, b_{L-1}, out_ref)
        param_refs = refs[: 2 * n_linear]
        out_ref = refs[2 * n_linear]

        h = x_ref[...]                              # bf16 (or f32, cast below)
        li = 0
        for tag in layer_seq:
            if tag == "linear":
                w = param_refs[2 * li][...]         # (fan_in_p, fan_out_p), bf16
                b = param_refs[2 * li + 1][...]     # (1, fan_out_p), f32
                h = jnp.dot(h.astype(compute_dtype), w,
                            preferred_element_type=jnp.float32) + b
                li += 1
            else:
                # tanh-approx GELU in bf16 routes the transcendental to the EUP
                # (free VLIW slot) and halves VALU width on v6e/v7x.
                h = jax.nn.gelu(h.astype(gelu_dtype), approximate=gelu_approximate)
        out_ref[...] = h.astype(out_ref.dtype)

    return kernel


def mlp_block_pallas(x, w_p, b_p, layer_seq, out_dim, *, tile_rows=None,
                     compute_dtype=jnp.bfloat16, gelu_approximate=True,
                     gelu_dtype=jnp.bfloat16, out_dtype=None):
    """Runs the fused MLP.

    x: (N, in_dim); w_p / b_p: output of prepare_params (already padded+cast).
    Returns (N, out_dim) in out_dtype (default: x.dtype).
    """
    N, in_dim = x.shape
    n_linear = len(w_p)
    in_dim_p = int(w_p[0].shape[0])
    out_dim_p = int(w_p[-1].shape[1])
    out_dtype = x.dtype if out_dtype is None else out_dtype

    # ---- row-tile selection: aim for >= 2 (ideally ~4) grid steps ----
    if tile_rows is None:
        tile_rows = min(512, _round_up(max(pl.cdiv(N, 4), 1), 256))

    # ---- explicit VMEM budget (portable to v7x's 64 MiB) ----
    param_bytes = sum(int(a.size) * a.dtype.itemsize for a in (*w_p, *b_p))
    max_fo_p = max(int(w.shape[1]) for w in w_p)

    def vmem_estimate(tr, x_item, out_item):
        return (param_bytes                       # resident weights + biases
                + 2 * tr * in_dim_p * x_item      # double-buffered input tile
                + 2 * tr * out_dim_p * out_item   # double-buffered output tile
                + 2 * tr * max_fo_p * 4)          # f32 intermediates (headroom)

    while vmem_estimate(tile_rows, 4, 4) > VMEM_BUDGET and tile_rows > 256:
        tile_rows //= 2
    if param_bytes > VMEM_BUDGET:
        # TODO(synk): tile the widest layer's fan_out on an extra grid axis (or
        # pltpu.emit_pipeline over layers) instead of full weight residency.
        raise ValueError("padded parameters exceed the per-core VMEM budget")

    n_tiles = max(pl.cdiv(N, tile_rows), 1)
    N_p = n_tiles * tile_rows

    # ---- pad/cast x only when actually required ----
    need_pad = (in_dim != in_dim_p) or (N_p != N)
    if need_pad:
        x_in = jnp.zeros((N_p, in_dim_p), compute_dtype).at[:N, :in_dim].set(
            x.astype(compute_dtype))
    else:
        x_in = x   # cast to compute_dtype happens in-register inside the kernel

    vmem_limit = int(min(max(
        vmem_estimate(tile_rows, x_in.dtype.itemsize,
                      jnp.dtype(out_dtype).itemsize) * 3 // 2,
        32 << 20), 56 << 20))

    kernel = make_mlp_kernel(layer_seq, n_linear, compute_dtype,
                             gelu_approximate, gelu_dtype)

    # x tiled over rows; weights/biases fully resident in VMEM (constant
    # operands, no per-step double buffering).
    resident_vmem = pl.BlockSpec(memory_space=pltpu.MemorySpace.VMEM)
    in_specs = [pl.BlockSpec((tile_rows, in_dim_p), lambda i: (i, 0))]
    params = []
    for w, b in zip(w_p, b_p):
        in_specs += [resident_vmem, resident_vmem]
        params += [w, b]
    out_specs = pl.BlockSpec((tile_rows, out_dim_p), lambda i: (i, 0))

    # ---- advisory cost estimate ----
    flops = 2 * N_p * sum(int(w.shape[0]) * int(w.shape[1]) for w in w_p)
    transcendentals = 0
    cur_w = in_dim_p
    li = 0
    for tag in layer_seq:
        if tag == "linear":
            cur_w = int(w_p[li].shape[1])
            li += 1
        else:
            transcendentals += N_p * cur_w
    bytes_accessed = (int(x_in.size) * x_in.dtype.itemsize + param_bytes
                      + N_p * out_dim_p * jnp.dtype(out_dtype).itemsize)

    out_p = pl.pallas_call(
        kernel,
        out_shape=jax.ShapeDtypeStruct((N_p, out_dim_p), out_dtype),
        grid_spec=pltpu.PrefetchScalarGridSpec(
            num_scalar_prefetch=0,
            grid=(n_tiles,),
            in_specs=in_specs,
            out_specs=out_specs,
        ),
        compiler_params=pltpu.CompilerParams(
            # Rows are independent; if an xprof trace on v7x shows one idle
            # TensorCore, switch this axis to pltpu.CORE_PARALLEL.
            dimension_semantics=("parallel",),
            vmem_limit_bytes=vmem_limit,
        ),
        cost_estimate=pl.CostEstimate(
            flops=int(flops),
            transcendentals=int(transcendentals),
            bytes_accessed=int(bytes_accessed),
        ),
    )(x_in, *params)

    if N_p != N or out_dim_p != out_dim:
        out_p = out_p[:N, :out_dim]
    return out_p


def init_params(linear_dims, key):
    """Deterministic init mimicking nn.Linear default (uniform +-1/sqrt(fan_in)).

    Weights are returned already transposed to (fan_in, fan_out); biases as
    (1, fan_out).  Kept in f32; prepare_params casts/pads once.
    """
    weights, biases = [], []
    for (fan_in, fan_out) in linear_dims:
        key, kw, kb = jax.random.split(key, 3)
        bound = 1.0 / jnp.sqrt(jnp.float32(fan_in))
        w = jax.random.uniform(kw, (fan_in, fan_out), jnp.float32, -bound, bound)
        b = jax.random.uniform(kb, (1, fan_out), jnp.float32, -bound, bound)
        weights.append(w)
        biases.append(b)
    return weights, biases


def mlp_block_ref(x, weights, biases, layer_seq, *, compute_dtype=jnp.bfloat16,
                  gelu_approximate=True, gelu_dtype=jnp.bfloat16, out_dtype=None):
    """Pure-JAX reference matching the Sequential with the same dtype pattern."""
    out_dtype = x.dtype if out_dtype is None else out_dtype
    h = x
    li = 0
    for tag in layer_seq:
        if tag == "linear":
            h = jnp.dot(h.astype(compute_dtype), weights[li].astype(compute_dtype),
                        preferred_element_type=jnp.float32) + biases[li].astype(jnp.float32)
            li += 1
        else:
            h = jax.nn.gelu(h.astype(gelu_dtype), approximate=gelu_approximate)
    return h.astype(out_dtype)


if __name__ == "__main__":
    # Small config consistent with MLPBlock(cfg, in_dim, out_dim).
    cfg = [64, "gelu", 64, "gelu"]
    in_dim, out_dim = 32, 32
    N = 512            # flattened batch/sequence rows -> tile_rows=256, 2 grid steps

    layer_seq, linear_dims = parse_cfg(cfg, in_dim, out_dim)

    key = jax.random.PRNGKey(0)
    key, kx = jax.random.split(key)
    x = jax.random.normal(kx, (N, in_dim), jnp.float32)
    weights, biases = init_params(linear_dims, key)

    # One-time parameter padding + bf16 cast (hoisted out of the forward pass).
    w_p, b_p = prepare_params(weights, biases, in_dim)

    out = mlp_block_pallas(x, w_p, b_p, layer_seq, out_dim)
    out = jax.block_until_ready(out)

    ref = mlp_block_ref(x, weights, biases, layer_seq)
    assert out.shape == (N, out_dim)
    assert jnp.allclose(out, ref, atol=2e-2, rtol=2e-2), "mismatch vs reference"

    print("KERNEL_OK")
</pallas_src>

<mosaic_0001>
module attributes {stable_mosaic.version = 11 : i64} {
  func.func @kernel(%arg0: i32, %arg1: memref<256x128xbf16, #tpu.memory_space<vmem>>, %arg2: memref<128x128xbf16, #tpu.memory_space<vmem>>, %arg3: memref<1x128xf32, #tpu.memory_space<vmem>>, %arg4: memref<128x128xbf16, #tpu.memory_space<vmem>>, %arg5: memref<1x128xf32, #tpu.memory_space<vmem>>, %arg6: memref<128x128xbf16, #tpu.memory_space<vmem>>, %arg7: memref<1x128xf32, #tpu.memory_space<vmem>>, %arg8: memref<256x128xf32, #tpu.memory_space<vmem>>) attributes {dimension_semantics = [#tpu.dimension_semantics<parallel>], iteration_bounds = array<i64: 2>, scalar_prefetch = 0 : i64, scratch_operands = 0 : i64, tpu.core_type = #tpu.core_type<tc>, window_params = [{transform_indices = @transform_0, window_bounds = array<i64: 256, 128>}, {pipeline_mode = #tpu.pipeline_mode<synchronous>, transform_indices = @transform_1, window_bounds = array<i64: 128, 128>}, {pipeline_mode = #tpu.pipeline_mode<synchronous>, transform_indices = @transform_2, window_bounds = array<i64: 1, 128>}, {pipeline_mode = #tpu.pipeline_mode<synchronous>, transform_indices = @transform_3, window_bounds = array<i64: 128, 128>}, {pipeline_mode = #tpu.pipeline_mode<synchronous>, transform_indices = @transform_4, window_bounds = array<i64: 1, 128>}, {pipeline_mode = #tpu.pipeline_mode<synchronous>, transform_indices = @transform_5, window_bounds = array<i64: 128, 128>}, {pipeline_mode = #tpu.pipeline_mode<synchronous>, transform_indices = @transform_6, window_bounds = array<i64: 1, 128>}, {transform_indices = @transform_7, window_bounds = array<i64: 256, 128>}]} {
    %c0 = arith.constant 0 : index
    %c0_0 = arith.constant 0 : index
    %0 = vector.load %arg1[%c0, %c0_0] : memref<256x128xbf16, #tpu.memory_space<vmem>>, vector<256x128xbf16>
    %c0_1 = arith.constant 0 : index
    %c0_2 = arith.constant 0 : index
    %1 = vector.load %arg2[%c0_1, %c0_2] : memref<128x128xbf16, #tpu.memory_space<vmem>>, vector<128x128xbf16>
    %c0_3 = arith.constant 0 : index
    %c0_4 = arith.constant 0 : index
    %2 = vector.load %arg3[%c0_3, %c0_4] : memref<1x128xf32, #tpu.memory_space<vmem>>, vector<1x128xf32>
    %cst = arith.constant dense<0.000000e+00> : vector<256x128xf32>
    %3 = tpu.matmul %0, %1, %cst {dimension_numbers = #tpu.dot_dimension_numbers<[1], [0], [0], [1], [0, 0, 1, 1], [], []>} : vector<256x128xbf16>, vector<128x128xbf16>, vector<256x128xf32> -> vector<256x128xf32>
    %4 = vector.broadcast %2 : vector<1x128xf32> to vector<256x128xf32>
    %5 = arith.addf %3, %4 : vector<256x128xf32>
    %6 = arith.truncf %5 : vector<256x128xf32> to vector<256x128xbf16>
    %7 = arith.mulf %6, %6 : vector<256x128xbf16>
    %8 = arith.mulf %6, %7 : vector<256x128xbf16>
    %cst_5 = arith.constant 4.467770e-02 : bf16
    %9 = vector.broadcast %cst_5 : bf16 to vector<256x128xbf16>
    %10 = arith.mulf %9, %8 : vector<256x128xbf16>
    %11 = arith.addf %6, %10 : vector<256x128xbf16>
    %cst_6 = arith.constant 7.968750e-01 : bf16
    %12 = vector.broadcast %cst_6 : bf16 to vector<256x128xbf16>
    %13 = arith.mulf %12, %11 : vector<256x128xbf16>
    %14 = math.tanh %13 : vector<256x128xbf16>
    %cst_7 = arith.constant 1.000000e+00 : bf16
    %15 = vector.broadcast %cst_7 : bf16 to vector<256x128xbf16>
    %16 = arith.addf %15, %14 : vector<256x128xbf16>
    %cst_8 = arith.constant 5.000000e-01 : bf16
    %17 = vector.broadcast %cst_8 : bf16 to vector<256x128xbf16>
    %18 = arith.mulf %17, %16 : vector<256x128xbf16>
    %19 = arith.mulf %6, %18 : vector<256x128xbf16>
    %c0_9 = arith.constant 0 : index
    %c0_10 = arith.constant 0 : index
    %20 = vector.load %arg4[%c0_9, %c0_10] : memref<128x128xbf16, #tpu.memory_space<vmem>>, vector<128x128xbf16>
    %c0_11 = arith.constant 0 : index
    %c0_12 = arith.constant 0 : index
    %21 = vector.load %arg5[%c0_11, %c0_12] : memref<1x128xf32, #tpu.memory_space<vmem>>, vector<1x128xf32>
    %cst_13 = arith.constant dense<0.000000e+00> : vector<256x128xf32>
    %22 = tpu.matmul %19, %20, %cst_13 {dimension_numbers = #tpu.dot_dimension_numbers<[1], [0], [0], [1], [0, 0, 1, 1], [], []>} : vector<256x128xbf16>, vector<128x128xbf16>, vector<256x128xf32> -> vector<256x128xf32>
    %23 = vector.broadcast %21 : vector<1x128xf32> to vector<256x128xf32>
    %24 = arith.addf %22, %23 : vector<256x128xf32>
    %25 = arith.truncf %24 : vector<256x128xf32> to vector<256x128xbf16>
    %26 = arith.mulf %25, %25 : vector<256x128xbf16>
    %27 = arith.mulf %25, %26 : vector<256x128xbf16>
    %cst_14 = arith.constant 4.467770e-02 : bf16
    %28 = vector.broadcast %cst_14 : bf16 to vector<256x128xbf16>
    %29 = arith.mulf %28, %27 : vector<256x128xbf16>
    %30 = arith.addf %25, %29 : vector<256x128xbf16>
    %cst_15 = arith.constant 7.968750e-01 : bf16
    %31 = vector.broadcast %cst_15 : bf16 to vector<256x128xbf16>
    %32 = arith.mulf %31, %30 : vector<256x128xbf16>
    %33 = math.tanh %32 : vector<256x128xbf16>
    %cst_16 = arith.constant 1.000000e+00 : bf16
    %34 = vector.broadcast %cst_16 : bf16 to vector<256x128xbf16>
    %35 = arith.addf %34, %33 : vector<256x128xbf16>
    %cst_17 = arith.constant 5.000000e-01 : bf16
    %36 = vector.broadcast %cst_17 : bf16 to vector<256x128xbf16>
    %37 = arith.mulf %36, %35 : vector<256x128xbf16>
    %38 = arith.mulf %25, %37 : vector<256x128xbf16>
    %c0_18 = arith.constant 0 : index
    %c0_19 = arith.constant 0 : index
    %39 = vector.load %arg6[%c0_18, %c0_19] : memref<128x128xbf16, #tpu.memory_space<vmem>>, vector<128x128xbf16>
    %c0_20 = arith.constant 0 : index
    %c0_21 = arith.constant 0 : index
    %40 = vector.load %arg7[%c0_20, %c0_21] : memref<1x128xf32, #tpu.memory_space<vmem>>, vector<1x128xf32>
    %cst_22 = arith.constant dense<0.000000e+00> : vector<256x128xf32>
    %41 = tpu.matmul %38, %39, %cst_22 {dimension_numbers = #tpu.dot_dimension_numbers<[1], [0], [0], [1], [0, 0, 1, 1], [], []>} : vector<256x128xbf16>, vector<128x128xbf16>, vector<256x128xf32> -> vector<256x128xf32>
    %42 = vector.broadcast %40 : vector<1x128xf32> to vector<256x128xf32>
    %43 = arith.addf %41, %42 : vector<256x128xf32>
    %c0_23 = arith.constant 0 : index
    %c0_24 = arith.constant 0 : index
    %44 = vector.load %arg8[%c0_23, %c0_24] : memref<256x128xf32, #tpu.memory_space<vmem>>, vector<256x128xf32>
    tpu.vector_store %arg8[%c0_23, %c0_24], %43 {strides = array<i32>} : memref<256x128xf32, #tpu.memory_space<vmem>>, vector<256x128xf32>,
    return
  }
  func.func @transform_0(%arg0: i32) -> (i32, i32) {
    %c0_i32 = arith.constant 0 : i32
    %c0_i32_0 = arith.constant 0 : i32
    return %arg0, %c0_i32 : i32, i32
  }
  func.func @transform_1(%arg0: i32) -> (i32, i32) {
    %c0_i32 = arith.constant 0 : i32
    %c0_i32_0 = arith.constant 0 : i32
    %c0_i32_1 = arith.constant 0 : i32
    return %c0_i32, %c0_i32_0 : i32, i32
  }
  func.func @transform_2(%arg0: i32) -> (i32, i32) {
    %c0_i32 = arith.constant 0 : i32
    %c0_i32_0 = arith.constant 0 : i32
    %c0_i32_1 = arith.constant 0 : i32
    return %c0_i32, %c0_i32_0 : i32, i32
  }
  func.func @transform_3(%arg0: i32) -> (i32, i32) {
    %c0_i32 = arith.constant 0 : i32
    %c0_i32_0 = arith.constant 0 : i32
    %c0_i32_1 = arith.constant 0 : i32
    return %c0_i32, %c0_i32_0 : i32, i32
  }
  func.func @transform_4(%arg0: i32) -> (i32, i32) {
    %c0_i32 = arith.constant 0 : i32
    %c0_i32_0 = arith.constant 0 : i32
    %c0_i32_1 = arith.constant 0 : i32
    return %c0_i32, %c0_i32_0 : i32, i32
  }
  func.func @transform_5(%arg0: i32) -> (i32, i32) {
    %c0_i32 = arith.constant 0 : i32
    %c0_i32_0 = arith.constant 0 : i32
    %c0_i32_1 = arith.constant 0 : i32
    return %c0_i32, %c0_i32_0 : i32, i32
  }
  func.func @transform_6(%arg0: i32) -> (i32, i32) {
    %c0_i32 = arith.constant 0 : i32
    %c0_i32_0 = arith.constant 0 : i32
    %c0_i32_1 = arith.constant 0 : i32
    return %c0_i32, %c0_i32_0 : i32, i32
  }
  func.func @transform_7(%arg0: i32) -> (i32, i32) {
    %c0_i32 = arith.constant 0 : i32
    %c0_i32_0 = arith.constant 0 : i32
    return %arg0, %c0_i32 : i32, i32
  }
}

</mosaic_0001>

<llo_original>
// kernel: tpu_custom_call.1
$region0: #{tpu_custom_call.1}
  #allocation0 [shape = 'u32[]', space=smem, size = 0x4, offset = 0x4, fixed_abs, tag = 'smem constant byte address 0x4 - core index']
  #allocation1 [shape = 'u32[144,128]{1,0:T(1,128)}', space=vmem, size = 0x12000, scoped, tag = 'internal scratch']
  %s0 = inlined_call_operand.hbm [shape: bf16[512,128], index: 0, kind: input, shape index: {}]
  %s1 = inlined_call_operand.hbm [shape: bf16[128,128], index: 1, kind: input, shape index: {}]
  %s2 = inlined_call_operand.vmem [shape: f32[1,128], index: 2, kind: input, shape index: {}]
  %s3 = inlined_call_operand.hbm [shape: bf16[128,128], index: 3, kind: input, shape index: {}]
  %s4 = inlined_call_operand.vmem [shape: f32[1,128], index: 4, kind: input, shape index: {}]
  %s5 = inlined_call_operand.hbm [shape: bf16[128,128], index: 5, kind: input, shape index: {}]
  %s6 = inlined_call_operand.vmem [shape: f32[1,128], index: 6, kind: input, shape index: {}]
  %s7 = inlined_call_operand.hbm [shape: f32[512,128], index: 7, kind: output, shape index: {}]
  %s8 = sld [smem:[#allocation0]]
  $region77: #{tpu_custom_call.1} parent=0
    _
  %s10 = ssub.s32 1, %s8
  %s11 = scalar_select 0, %s10, %s8
  $region1: #{tpu_custom_call.1} parent=0
    #allocation2 [shape = 'u8[131072]{0}', space=vmem, size = 0x20000, scoped, tag = 'input window, operand 0']
    #allocation3 [shape = 's32[2]{0}', space=sflag, size = 0x8, scoped, tag = 'scoped memory for tpu_custom_call.1']
    #allocation4 [shape = 's32[2]{0}', space=sflag, size = 0x8, scoped, tag = 'scoped memory for tpu_custom_call.1']
    #allocation5 [shape = 'u8[32768]{0}', space=vmem, size = 0x8000, scoped, tag = 'input window, operand 1, single buffered']
    #allocation6 [shape = 's32[1]{0}', space=sflag, size = 0x4, scoped, tag = 'scoped memory for tpu_custom_call.1']
    #allocation7 [shape = 'u8[32768]{0}', space=vmem, size = 0x8000, scoped, tag = 'input window, operand 3, single buffered']
    #allocation8 [shape = 'u8[32768]{0}', space=vmem, size = 0x8000, scoped, tag = 'input window, operand 5, single buffered']
    #allocation9 [shape = 's32[1]{0}', space=sflag, size = 0x4, scoped, tag = 'scoped memory for tpu_custom_call.1']
    #allocation10 [shape = 'u8[262144]{0}', space=vmem, size = 0x40000, scoped, tag = 'output window, operand 0']
    %12 = vsyncpa [#allocation3], 0
    %s13 = scalar_lea.sflag [#allocation3], 1
    %14 = vsyncpa %s13, 0
    %15 = vsyncpa [#allocation6], 0
    %16 = vsyncpa [#allocation9], 0
    %17 = vsyncpa [#allocation4], 0
    %s18 = scalar_lea.sflag [#allocation4], 1
    %19 = vsyncpa %s18, 0
    loop: start=0, step=1, limit=4
    $region2: #{tpu_custom_call.1} parent=1 // loop_pre_header
      _
    $region3: #{tpu_custom_call.1} parent=1 // loop_header
      %s21 = sphi 0, %s25
      %p22 = scmp.ge.s32.totalorder %s21, 4
      %s31 = sphi 0, %s33
      %s34 = sphi 0, %s31
      %s35 = sphi 0, %s34
      %s51 = sphi 0, %s35
      %s55 = sphi 0, %s55
      %s57 = sphi 0, %s55
      %s58 = sphi 0, %s57
      %s72 = sphi 0, %s58
      %s76 = sphi 0, %s76
      %s78 = sphi 0, %s76
      %s79 = sphi 0, %s78
      %s93 = sphi 0, %s79
      %s97 = sphi 0, %s97
      %s99 = sphi 0, %s97
      %s100 = sphi 0, %s99
      %s114 = sphi 0, %s100
      %s118 = sphi 0, %s118
      %s120 = sphi 0, %s118
      %s121 = sphi 0, %s120
      %s135 = sphi 0, %s121
      %s139 = sphi 0, %s139
      %s141 = sphi 0, %s139
      %s142 = sphi 0, %s141
      %s156 = sphi 0, %s142
      %s160 = sphi 0, %s160
      %s162 = sphi 0, %s160
      %s163 = sphi 0, %s162
      %s177 = sphi 0, %s163
      %s183 = sphi 0, %s185
      %s186 = sphi 0, %s183
      %s187 = sphi 0, %s186
      %s203 = sphi 0, %s187
    $region4: #{tpu_custom_call.1} parent=1 // loop_header_branch
      %24 = sbr.rel (%p22) target = $region8
    $region5: #{tpu_custom_call.1} parent=1 // loop_body
      %s26 = ssub.s32 %s21, 1
      %s27 = ssub.s32 %s21, 2
      %s28 = sadd.s32 %s21, 1
      %s29 = ssub.s32 %s21, %s28
      %p30 = scmp.eq.s32.totalorder %s29, 0
      %s32 = sadd.s32 %s31, 1
      %s33 = scalar_select %p30, %s31, %s32
      %p36 = pneg %p30
      %p37 = scmp.eq.s32.totalorder %s21, 1
      %p38 = por %p36, %p37
      %p39 = scmp.ne.s32.totalorder %s31, %s34
      %p40 = scmp.eq.s32.totalorder %s21, 0
      %p41 = por %p39, %p40
      %p42 = scmp.ne.s32.totalorder %s31, %s34
      %p43 = scmp.eq.s32.totalorder %s26, 1
      %p44 = por %p42, %p43
      %p45 = scmp.ne.s32.totalorder %s34, %s35
      %p46 = scmp.eq.s32.totalorder %s26, 0
      %p47 = por %p45, %p46
      %p48 = scmp.ne.s32.totalorder %s34, %s35
      %p49 = scmp.eq.s32.totalorder %s27, 1
      %p50 = por %p48, %p49
      %p52 = scmp.ne.s32.totalorder %s35, %s51
      %p53 = scmp.eq.s32.totalorder %s27, 0
      %p54 = por %p52, %p53
      %s56 = sadd.s32 %s55, 1
      %p59 = scmp.eq.s32.totalorder %s21, 1
      %p60 = scmp.ne.s32.totalorder %s55, %s57
      %p61 = scmp.eq.s32.totalorder %s21, 0
      %p62 = por %p60, %p61
      %p63 = scmp.ne.s32.totalorder %s55, %s57
      %p64 = scmp.eq.s32.totalorder %s26, 1
      %p65 = por %p63, %p64
      %p66 = scmp.ne.s32.totalorder %s57, %s58
      %p67 = scmp.eq.s32.totalorder %s26, 0
      %p68 = por %p66, %p67
      %p69 = scmp.ne.s32.totalorder %s57, %s58
      %p70 = scmp.eq.s32.totalorder %s27, 1
      %p71 = por %p69, %p70
      %p73 = scmp.ne.s32.totalorder %s58, %s72
      %p74 = scmp.eq.s32.totalorder %s27, 0
      %p75 = por %p73, %p74
      %s77 = sadd.s32 %s76, 1
      %p80 = scmp.eq.s32.totalorder %s21, 1
      %p81 = scmp.ne.s32.totalorder %s76, %s78
      %p82 = scmp.eq.s32.totalorder %s21, 0
      %p83 = por %p81, %p82
      %p84 = scmp.ne.s32.totalorder %s76, %s78
      %p85 = scmp.eq.s32.totalorder %s26, 1
      %p86 = por %p84, %p85
      %p87 = scmp.ne.s32.totalorder %s78, %s79
      %p88 = scmp.eq.s32.totalorder %s26, 0
      %p89 = por %p87, %p88
      %p90 = scmp.ne.s32.totalorder %s78, %s79
      %p91 = scmp.eq.s32.totalorder %s27, 1
      %p92 = por %p90, %p91
      %p94 = scmp.ne.s32.totalorder %s79, %s93
      %p95 = scmp.eq.s32.totalorder %s27, 0
      %p96 = por %p94, %p95
      %s98 = sadd.s32 %s97, 1
      %p101 = scmp.eq.s32.totalorder %s21, 1
      %p102 = scmp.ne.s32.totalorder %s97, %s99
      %p103 = scmp.eq.s32.totalorder %s21, 0
      %p104 = por %p102, %p103
      %p105 = scmp.ne.s32.totalorder %s97, %s99
      %p106 = scmp.eq.s32.totalorder %s26, 1
      %p107 = por %p105, %p106
      %p108 = scmp.ne.s32.totalorder %s99, %s100
      %p109 = scmp.eq.s32.totalorder %s26, 0
      %p110 = por %p108, %p109
      %p111 = scmp.ne.s32.totalorder %s99, %s100
      %p112 = scmp.eq.s32.totalorder %s27, 1
      %p113 = por %p111, %p112
      %p115 = scmp.ne.s32.totalorder %s100, %s114
      %p116 = scmp.eq.s32.totalorder %s27, 0
      %p117 = por %p115, %p116
      %s119 = sadd.s32 %s118, 1
      %p122 = scmp.eq.s32.totalorder %s21, 1
      %p123 = scmp.ne.s32.totalorder %s118, %s120
      %p124 = scmp.eq.s32.totalorder %s21, 0
      %p125 = por %p123, %p124
      %p126 = scmp.ne.s32.totalorder %s118, %s120
      %p127 = scmp.eq.s32.totalorder %s26, 1
      %p128 = por %p126, %p127
      %p129 = scmp.ne.s32.totalorder %s120, %s121
      %p130 = scmp.eq.s32.totalorder %s26, 0
      %p131 = por %p129, %p130
      %p132 = scmp.ne.s32.totalorder %s120, %s121
      %p133 = scmp.eq.s32.totalorder %s27, 1
      %p134 = por %p132, %p133
      %p136 = scmp.ne.s32.totalorder %s121, %s135
      %p137 = scmp.eq.s32.totalorder %s27, 0
      %p138 = por %p136, %p137
      %s140 = sadd.s32 %s139, 1
      %p143 = scmp.eq.s32.totalorder %s21, 1
      %p144 = scmp.ne.s32.totalorder %s139, %s141
      %p145 = scmp.eq.s32.totalorder %s21, 0
      %p146 = por %p144, %p145
      %p147 = scmp.ne.s32.totalorder %s139, %s141
      %p148 = scmp.eq.s32.totalorder %s26, 1
      %p149 = por %p147, %p148
      %p150 = scmp.ne.s32.totalorder %s141, %s142
      %p151 = scmp.eq.s32.totalorder %s26, 0
      %p152 = por %p150, %p151
      %p153 = scmp.ne.s32.totalorder %s141, %s142
      %p154 = scmp.eq.s32.totalorder %s27, 1
      %p155 = por %p153, %p154
      %p157 = scmp.ne.s32.totalorder %s142, %s156
      %p158 = scmp.eq.s32.totalorder %s27, 0
      %p159 = por %p157, %p158
      %s161 = sadd.s32 %s160, 1
      %p164 = scmp.eq.s32.totalorder %s21, 1
      %p165 = scmp.ne.s32.totalorder %s160, %s162
      %p166 = scmp.eq.s32.totalorder %s21, 0
      %p167 = por %p165, %p166
      %p168 = scmp.ne.s32.totalorder %s160, %s162
      %p169 = scmp.eq.s32.totalorder %s26, 1
      %p170 = por %p168, %p169
      %p171 = scmp.ne.s32.totalorder %s162, %s163
      %p172 = scmp.eq.s32.totalorder %s26, 0
      %p173 = por %p171, %p172
      %p174 = scmp.ne.s32.totalorder %s162, %s163
      %p175 = scmp.eq.s32.totalorder %s27, 1
      %p176 = por %p174, %p175
      %p178 = scmp.ne.s32.totalorder %s163, %s177
      %p179 = scmp.eq.s32.totalorder %s27, 0
      %p180 = por %p178, %p179
      %s181 = ssub.s32 %s21, %s28
      %p182 = scmp.eq.s32.totalorder %s181, 0
      %s184 = sadd.s32 %s183, 1
      %s185 = scalar_select %p182, %s183, %s184
      %p188 = pneg %p182
      %p189 = scmp.eq.s32.totalorder %s21, 1
      %p190 = por %p188, %p189
      %p191 = scmp.ne.s32.totalorder %s183, %s186
      %p192 = scmp.eq.s32.totalorder %s21, 0
      %p193 = por %p191, %p192
      %p194 = scmp.ne.s32.totalorder %s183, %s186
      %p195 = scmp.eq.s32.totalorder %s26, 1
      %p196 = por %p194, %p195
      %p197 = scmp.ne.s32.totalorder %s186, %s187
      %p198 = scmp.eq.s32.totalorder %s26, 0
      %p199 = por %p197, %p198
      %p200 = scmp.ne.s32.totalorder %s186, %s187
      %p201 = scmp.eq.s32.totalorder %s27, 1
      %p202 = por %p200, %p201
      %p204 = scmp.ne.s32.totalorder %s187, %s203
      %p205 = scmp.eq.s32.totalorder %s27, 0
      %p206 = por %p204, %p205
      %p207 = scmp.le.s32.totalorder 1, %s21
      %p208 = scmp.lt.s32.totalorder %s21, 3
      %p209 = pnand %p207, %p208
      %p210 = pneg %p209
      // Predicated region
      $region9: #{tpu_custom_call.1} parent=5 // pred_check
        _
      $region10: #{tpu_custom_call.1} parent=5 // pred_check_branch
        %212 = sbr.rel (%p209) target = $region12
      $region11: #{tpu_custom_call.1} parent=5 // pred_region
        %s213 = ssub.s32 %s21, 1
        // Predicated region
        $region13: #{tpu_custom_call.1} parent=11 // pred_check
          %p214 = pneg %p68
        $region14: #{tpu_custom_call.1} parent=11 // pred_check_branch
          %216 = sbr.rel (%p214) target = $region16
        $region15: #{tpu_custom_call.1} parent=11 // pred_region
          %s218 = ssub.s32 1024, 1024
          %219 = vsyncadd [#allocation6], %s218
          %s220 = sshll.u32 [#allocation5], 4
          %s221 = int_to_ptr.vmem [resolvable:$true] %s220
          %226 = dma.hbm_to_vmem [thread:$0]  %s1, 1024, %s221, [#allocation6], 64, 64, 4
        $region16: #{tpu_custom_call.1} parent=11 // pred_fallthru
          _
        // Predicated region
        $region17: #{tpu_custom_call.1} parent=11 // pred_check
          %p227 = pneg %p89
        $region18: #{tpu_custom_call.1} parent=11 // pred_check_branch
          %229 = sbr.rel (%p227) target = $region20
        $region19: #{tpu_custom_call.1} parent=11 // pred_region
          _
        $region20: #{tpu_custom_call.1} parent=11 // pred_fallthru
          _
        // Predicated region
        $region21: #{tpu_custom_call.1} parent=11 // pred_check
          %p230 = pneg %p110
        $region22: #{tpu_custom_call.1} parent=11 // pred_check_branch
          %232 = sbr.rel (%p230) target = $region24
        $region23: #{tpu_custom_call.1} parent=11 // pred_region
          %s234 = ssub.s32 1024, 1024
          %235 = vsyncadd [#allocation6], %s234
          %s236 = sshll.u32 [#allocation7], 4
          %s237 = int_to_ptr.vmem [resolvable:$true] %s236
          %242 = dma.hbm_to_vmem [thread:$0]  %s3, 1024, %s237, [#allocation6], 64, 64, 4
        $region24: #{tpu_custom_call.1} parent=11 // pred_fallthru
          _
        // Predicated region
        $region25: #{tpu_custom_call.1} parent=11 // pred_check
          %p243 = pneg %p131
        $region26: #{tpu_custom_call.1} parent=11 // pred_check_branch
          %245 = sbr.rel (%p243) target = $region28
        $region27: #{tpu_custom_call.1} parent=11 // pred_region
          _
        $region28: #{tpu_custom_call.1} parent=11 // pred_fallthru
          _
        // Predicated region
        $region29: #{tpu_custom_call.1} parent=11 // pred_check
          %p246 = pneg %p152
        $region30: #{tpu_custom_call.1} parent=11 // pred_check_branch
          %248 = sbr.rel (%p246) target = $region32
        $region31: #{tpu_custom_call.1} parent=11 // pred_region
          %s250 = ssub.s32 1024, 1024
          %251 = vsyncadd [#allocation9], %s250
          %s252 = sshll.u32 [#allocation8], 4
          %s253 = int_to_ptr.vmem [resolvable:$true] %s252
          %258 = dma.hbm_to_vmem [thread:$0]  %s5, 1024, %s253, [#allocation9], 64, 64, 4
        $region32: #{tpu_custom_call.1} parent=11 // pred_fallthru
          _
        // Predicated region
        $region33: #{tpu_custom_call.1} parent=11 // pred_check
          %p259 = pneg %p173
        $region34: #{tpu_custom_call.1} parent=11 // pred_check_branch
          %261 = sbr.rel (%p259) target = $region36
        $region35: #{tpu_custom_call.1} parent=11 // pred_region
          _
        $region36: #{tpu_custom_call.1} parent=11 // pred_fallthru
          _
      $region12: #{tpu_custom_call.1} parent=5 // pred_fallthru
        _
      %p262 = scmp.lt.s32.totalorder %s21, 2
      // Predicated region
      $region37: #{tpu_custom_call.1} parent=5 // pred_check
        %p263 = pneg %p262
      $region38: #{tpu_custom_call.1} parent=5 // pred_check_branch
        %265 = sbr.rel (%p263) target = $region40
      $region39: #{tpu_custom_call.1} parent=5 // pred_region
        // Predicated region
        $region41: #{tpu_custom_call.1} parent=39 // pred_check
          %p266 = pneg %p41
        $region42: #{tpu_custom_call.1} parent=39 // pred_check_branch
          %268 = sbr.rel (%p266) target = $region44
        $region43: #{tpu_custom_call.1} parent=39 // pred_region
          %s269 = sand.u32 %s31, 1
          %s270 = scalar_lea.sflag [#allocation3], %s269
          %s271 = sand.u32 %s31, 1
          %s272 = smul.addr %s271, 128
          %s273 = scalar_lea.vmem [#allocation2], %s272
          %s274 = smul.u32 32, %s21
          %s276 = ssub.s32 2048, 2048
          %277 = vsyncadd %s270, %s276
          %s278 = smul.addr %s274, 64
          %s279 = scalar_lea.hbm %s0, %s278
          %s280 = sshll.u32 %s273, 4
          %s281 = int_to_ptr.vmem [resolvable:$true] %s280
          %286 = dma.hbm_to_vmem [thread:$0]  %s279, 2048, %s281, %s270, 64, 64, 4
        $region44: #{tpu_custom_call.1} parent=39 // pred_fallthru
          _
      $region40: #{tpu_custom_call.1} parent=5 // pred_fallthru
        _
      %p287 = scmp.le.s32.totalorder 1, %s21
      %p288 = scmp.lt.s32.totalorder %s21, 3
      %p289 = pnand %p287, %p288
      %p290 = pneg %p289
      // Predicated region
      $region45: #{tpu_custom_call.1} parent=5 // pred_check
        _
      $region46: #{tpu_custom_call.1} parent=5 // pred_check_branch
        %292 = sbr.rel (%p289) target = $region48
      $region47: #{tpu_custom_call.1} parent=5 // pred_region
        %s293 = ssub.s32 %s21, 1
        %s294 = sand.u32 %s34, 1
        %s295 = scalar_lea.sflag [#allocation3], %s294
        %s296 = sand.u32 %s34, 1
        %s297 = smul.addr %s296, 128
        %s298 = scalar_lea.vmem [#allocation2], %s297
        // Predicated region
        $region49: #{tpu_custom_call.1} parent=47 // pred_check
          %p299 = pneg %p47
        $region50: #{tpu_custom_call.1} parent=47 // pred_check_branch
          %301 = sbr.rel (%p299) target = $region52
        $region51: #{tpu_custom_call.1} parent=47 // pred_region
          %302 = dma.done %s295, 2048
        $region52: #{tpu_custom_call.1} parent=47 // pred_fallthru
          _
        // Predicated region
        $region53: #{tpu_custom_call.1} parent=47 // pred_check
          %p303 = pneg %p68
        $region54: #{tpu_custom_call.1} parent=47 // pred_check_branch
          %305 = sbr.rel (%p303) target = $region56
        $region55: #{tpu_custom_call.1} parent=47 // pred_region
          %306 = dma.done [#allocation6], 1024
        $region56: #{tpu_custom_call.1} parent=47 // pred_fallthru
          _
        // Predicated region
        $region57: #{tpu_custom_call.1} parent=47 // pred_check
          %p307 = pneg %p110
        $region58: #{tpu_custom_call.1} parent=47 // pred_check_branch
          %309 = sbr.rel (%p307) target = $region60
        $region59: #{tpu_custom_call.1} parent=47 // pred_region
          %310 = dma.done [#allocation6], 1024
        $region60: #{tpu_custom_call.1} parent=47 // pred_fallthru
          _
        // Predicated region
        $region61: #{tpu_custom_call.1} parent=47 // pred_check
          %p311 = pneg %p152
        $region62: #{tpu_custom_call.1} parent=47 // pred_check_branch
          %313 = sbr.rel (%p311) target = $region64
        $region63: #{tpu_custom_call.1} parent=47 // pred_region
          %314 = dma.done [#allocation9], 1024
        $region64: #{tpu_custom_call.1} parent=47 // pred_fallthru
          _
        %s315 = sand.u32 %s34, 1
        %s316 = scalar_lea.sflag [#allocation3], %s315
        %s317 = sand.u32 %s34, 1
        %s318 = smul.addr %s317, 128
        %s319 = scalar_lea.vmem [#allocation2], %s318
        %p320 = pneg %p47
        %p321 = pneg %p44
        %p322 = pneg %p68
        %p323 = pneg %p65
        %p324 = pneg %p89
        %p325 = pneg %p86
        %p326 = pneg %p110
        %p327 = pneg %p107
        %p328 = pneg %p131
        %p329 = pneg %p128
        %p330 = pneg %p152
        %p331 = pneg %p149
        %p332 = pneg %p173
        %p333 = pneg %p170
        %p334 = pneg %p199
        %p335 = pneg %p196
        %s336 = sand.u32 %s186, 1
        %s337 = scalar_lea.sflag [#allocation4], %s336
        %s338 = sand.u32 %s186, 1
        %s339 = smul.addr %s338, 256
        %s340 = scalar_lea.vmem [#allocation10], %s339
        %s341 = smul.u32 32, %s26
        %s342 = smul.u32 32, %s26
        %v348 = vld [vmem:[%s298] sm:$0xf]
        %v349 = vld [vmem:[%s298 + $0x4] sm:$0xf]
        %v350 = vld [vmem:[%s298 + $0x8] sm:$0xf]
        %v351 = vld [vmem:[%s298 + $0xc] sm:$0xf]
        %v352 = vld [vmem:[%s298 + $0x10] sm:$0xf]
        %v353 = vld [vmem:[%s298 + $0x14] sm:$0xf]
        %v354 = vld [vmem:[%s298 + $0x18] sm:$0xf]
        %v355 = vld [vmem:[%s298 + $0x1c] sm:$0xf]
        %v356 = vld [vmem:[%s298 + $0x20] sm:$0xf]
        %v357 = vld [vmem:[%s298 + $0x24] sm:$0xf]
        %v358 = vld [vmem:[%s298 + $0x28] sm:$0xf]
        %v359 = vld [vmem:[%s298 + $0x2c] sm:$0xf]
        %v360 = vld [vmem:[%s298 + $0x30] sm:$0xf]
        %v361 = vld [vmem:[%s298 + $0x34] sm:$0xf]
        %v362 = vld [vmem:[%s298 + $0x38] sm:$0xf]
        %v363 = vld [vmem:[%s298 + $0x3c] sm:$0xf]
        %v364 = vld [vmem:[%s298 + $0x40] sm:$0xf]
        %v365 = vld [vmem:[%s298 + $0x44] sm:$0xf]
        %v366 = vld [vmem:[%s298 + $0x48] sm:$0xf]
        %v367 = vld [vmem:[%s298 + $0x4c] sm:$0xf]
        %v368 = vld [vmem:[%s298 + $0x50] sm:$0xf]
        %v369 = vld [vmem:[%s298 + $0x54] sm:$0xf]
        %v370 = vld [vmem:[%s298 + $0x58] sm:$0xf]
        %v371 = vld [vmem:[%s298 + $0x5c] sm:$0xf]
        %v372 = vld [vmem:[%s298 + $0x60] sm:$0xf]
        %v373 = vld [vmem:[%s298 + $0x64] sm:$0xf]
        %v374 = vld [vmem:[%s298 + $0x68] sm:$0xf]
        %v375 = vld [vmem:[%s298 + $0x6c] sm:$0xf]
        %v376 = vld [vmem:[%s298 + $0x70] sm:$0xf]
        %v377 = vld [vmem:[%s298 + $0x74] sm:$0xf]
        %v378 = vld [vmem:[%s298 + $0x78] sm:$0xf]
        %v379 = vld [vmem:[%s298 + $0x7c] sm:$0xf]
        %v380 = vld [vmem:[#allocation5] sm:$0xf]
        %v381 = vld [vmem:[#allocation5 + $0x4] sm:$0xf]
        %v382 = vld [vmem:[#allocation5 + $0x8] sm:$0xf]
        %v383 = vld [vmem:[#allocation5 + $0xc] sm:$0xf]
        %v384 = vld [vmem:[#allocation5 + $0x10] sm:$0xf]
        %v385 = vld [vmem:[#allocation5 + $0x14] sm:$0xf]
        %v386 = vld [vmem:[#allocation5 + $0x18] sm:$0xf]
        %v387 = vld [vmem:[#allocation5 + $0x1c] sm:$0xf]
        %v388 = vld [vmem:[#allocation5 + $0x20] sm:$0xf]
        %v389 = vld [vmem:[#allocation5 + $0x24] sm:$0xf]
        %v390 = vld [vmem:[#allocation5 + $0x28] sm:$0xf]
        %v391 = vld [vmem:[#allocation5 + $0x2c] sm:$0xf]
        %v392 = vld [vmem:[#allocation5 + $0x30] sm:$0xf]
        %v393 = vld [vmem:[#allocation5 + $0x34] sm:$0xf]
        %v394 = vld [vmem:[#allocation5 + $0x38] sm:$0xf]
        %v395 = vld [vmem:[#allocation5 + $0x3c] sm:$0xf]
        %v396 = vld [vmem:[%s2] sm:$0x1]
        %v398 = vlaneseq
        %v399 = vshrl.u32 %v398, 7
        %v400 = vsub.s32 0, %v399
        %v401 = vrot.slane %v396, %v400
        %v435 = vunpack.c.l.b16 %v348
        %v436 = vunpack.c.l.b16 %v349
        %v437 = vunpack.c.l.b16 %v350
        %v438 = vunpack.c.l.b16 %v351
        %v439 = vunpack.c.l.b16 %v352
        %v440 = vunpack.c.l.b16 %v353
        %v441 = vunpack.c.l.b16 %v354
        %v442 = vunpack.c.l.b16 %v355
        %v443 = vunpack.c.l.b16 %v356
        %v444 = vunpack.c.l.b16 %v357
        %v445 = vunpack.c.l.b16 %v358
        %v446 = vunpack.c.l.b16 %v359
        %v447 = vunpack.c.l.b16 %v360
        %v448 = vunpack.c.l.b16 %v361
        %v449 = vunpack.c.l.b16 %v362
        %v450 = vunpack.c.l.b16 %v363
        %v451 = vunpack.c.l.b16 %v364
        %v452 = vunpack.c.l.b16 %v365
        %v453 = vunpack.c.l.b16 %v366
        %v454 = vunpack.c.l.b16 %v367
        %v455 = vunpack.c.l.b16 %v368
        %v456 = vunpack.c.l.b16 %v369
        %v457 = vunpack.c.l.b16 %v370
        %v458 = vunpack.c.l.b16 %v371
        %v459 = vunpack.c.l.b16 %v372
        %v460 = vunpack.c.l.b16 %v373
        %v461 = vunpack.c.l.b16 %v374
        %v462 = vunpack.c.l.b16 %v375
        %v463 = vunpack.c.l.b16 %v376
        %v464 = vunpack.c.l.b16 %v377
        %v465 = vunpack.c.l.b16 %v378
        %v466 = vunpack.c.l.b16 %v379
        %v467 = vpack.c.b16 %v436, %v435
        %v468 = vpack.c.b16 %v438, %v437
        %v469 = vpack.c.b16 %v440, %v439
        %v470 = vpack.c.b16 %v442, %v441
        %v471 = vpack.c.b16 %v444, %v443
        %v472 = vpack.c.b16 %v446, %v445
        %v473 = vpack.c.b16 %v448, %v447
        %v474 = vpack.c.b16 %v450, %v449
        %v475 = vpack.c.b16 %v452, %v451
        %v476 = vpack.c.b16 %v454, %v453
        %v477 = vpack.c.b16 %v456, %v455
        %v478 = vpack.c.b16 %v458, %v457
        %v479 = vpack.c.b16 %v460, %v459
        %v480 = vpack.c.b16 %v462, %v461
        %v481 = vpack.c.b16 %v464, %v463
        %v482 = vpack.c.b16 %v466, %v465
        %v515 = vunpack.c.l.b16 %v380
        %v516 = vunpack.c.l.b16 %v381
        %v517 = vunpack.c.l.b16 %v382
        %v518 = vunpack.c.l.b16 %v383
        %v519 = vunpack.c.l.b16 %v384
        %v520 = vunpack.c.l.b16 %v385
        %v521 = vunpack.c.l.b16 %v386
        %v522 = vunpack.c.l.b16 %v387
        %v523 = vunpack.c.l.b16 %v388
        %v524 = vunpack.c.l.b16 %v389
        %v525 = vunpack.c.l.b16 %v390
        %v526 = vunpack.c.l.b16 %v391
        %v527 = vunpack.c.l.b16 %v392
        %v528 = vunpack.c.l.b16 %v393
        %v529 = vunpack.c.l.b16 %v394
        %v530 = vunpack.c.l.b16 %v395
        %v531 = vpack.c.b16 %v516, %v515
        %v532 = vpack.c.b16 %v518, %v517
        %v533 = vpack.c.b16 %v520, %v519
        %v534 = vpack.c.b16 %v522, %v521
        %v535 = vpack.c.b16 %v524, %v523
        %v536 = vpack.c.b16 %v526, %v525
        %v537 = vpack.c.b16 %v528, %v527
        %v538 = vpack.c.b16 %v530, %v529
        %547 = vmatprep.subr.bf16.mxu0 0
        %548 = vmatpush1.bf16.msra.mxu0 %v538
        %549 = vmatprep.subr.bf16.mxu0 0
        %550 = vmatpush1.bf16.msra.mxu0 %v537
        %551 = vmatprep.subr.bf16.mxu0 0
        %552 = vmatpush1.bf16.msra.mxu0 %v536
        %553 = vmatprep.subr.bf16.mxu0 0
        %554 = vmatpush1.bf16.msra.mxu0 %v535
        %555 = vmatprep.subr.bf16.mxu0 0
        %556 = vmatpush1.bf16.msra.mxu0 %v534
        %557 = vmatprep.subr.bf16.mxu0 0
        %558 = vmatpush1.bf16.msra.mxu0 %v533
        %559 = vmatprep.subr.bf16.mxu0 0
        %560 = vmatpush1.bf16.msra.mxu0 %v532
        %561 = vmatprep.subr.bf16.mxu0 0
        %562 = vmatpush1.bf16.msra.mxu0 %v531
        %563 = vmatprep.subr.bf16.mxu0 0
        %564 = vmatpush2.bf16.msra.mxu0 0
        %565 = vmatprep.subr.bf16.mxu0 0
        %566 = vmatpush2.bf16.msra.mxu0 0
        %567 = vmatprep.subr.bf16.mxu0 0
        %568 = vmatpush2.bf16.msra.mxu0 0
        %569 = vmatprep.subr.bf16.mxu0 0
        %570 = vmatpush2.bf16.msra.mxu0 0
        %571 = vmatprep.subr.bf16.mxu0 0
        %572 = vmatpush2.bf16.msra.mxu0 0
        %573 = vmatprep.subr.bf16.mxu0 0
        %574 = vmatpush2.bf16.msra.mxu0 0
        %575 = vmatprep.subr.bf16.mxu0 0
        %576 = vmatpush2.bf16.msra.mxu0 0
        %577 = vmatprep.subr.bf16.mxu0 0
        %578 = vmatpush2.bf16.msra.mxu0 0
        %579 = vmatprep.mubr.bf16.mxu0 0
        %580 = vmatmul.mubr.bf16.gmra.mxu0 %v467
        %v581 = vpop.f32.mrf.mxu0
        %v582 = vadd.f32 %v401, %v581
        %v583 = vpop.f32.mrf.mxu0
        %v584 = vpop.f32.mrf.mxu0
        %v585 = vadd.f32 %v401, %v584
        %v586 = vpop.f32.mrf.mxu0
        %587 = vmatprep.mubr.bf16.mxu0 0
        %588 = vmatmul.mubr.bf16.gmra.mxu0 %v468
        %v589 = vpop.f32.mrf.mxu0
        %v590 = vadd.f32 %v401, %v589
        %v591 = vpop.f32.mrf.mxu0
        %v592 = vpop.f32.mrf.mxu0
        %v593 = vadd.f32 %v401, %v592
        %v594 = vpop.f32.mrf.mxu0
        %595 = vmatprep.mubr.bf16.mxu0 0
        %596 = vmatmul.mubr.bf16.gmra.mxu0 %v469
        %v597 = vpop.f32.mrf.mxu0
        %v598 = vadd.f32 %v401, %v597
        %v599 = vpop.f32.mrf.mxu0
        %v600 = vpop.f32.mrf.mxu0
        %v601 = vadd.f32 %v401, %v600
        %v602 = vpop.f32.mrf.mxu0
        %603 = vmatprep.mubr.bf16.mxu0 0
        %604 = vmatmul.mubr.bf16.gmra.mxu0 %v470
        %v605 = vpop.f32.mrf.mxu0
        %v606 = vadd.f32 %v401, %v605
        %v607 = vpop.f32.mrf.mxu0
        %v608 = vpop.f32.mrf.mxu0
        %v609 = vadd.f32 %v401, %v608
        %v610 = vpop.f32.mrf.mxu0
        %611 = vmatprep.mubr.bf16.mxu0 0
        %612 = vmatmul.mubr.bf16.gmra.mxu0 %v471
        %v613 = vpop.f32.mrf.mxu0
        %v614 = vadd.f32 %v401, %v613
        %v615 = vpop.f32.mrf.mxu0
        %v616 = vpop.f32.mrf.mxu0
        %v617 = vadd.f32 %v401, %v616
        %v618 = vpop.f32.mrf.mxu0
        %619 = vmatprep.mubr.bf16.mxu0 0
        %620 = vmatmul.mubr.bf16.gmra.mxu0 %v472
        %v621 = vpop.f32.mrf.mxu0
        %v622 = vadd.f32 %v401, %v621
        %v623 = vpop.f32.mrf.mxu0
        %v624 = vpop.f32.mrf.mxu0
        %v625 = vadd.f32 %v401, %v624
        %v626 = vpop.f32.mrf.mxu0
        %627 = vmatprep.mubr.bf16.mxu0 0
        %628 = vmatmul.mubr.bf16.gmra.mxu0 %v473
        %v629 = vpop.f32.mrf.mxu0
        %v630 = vadd.f32 %v401, %v629
        %v631 = vpop.f32.mrf.mxu0
        %v632 = vpop.f32.mrf.mxu0
        %v633 = vadd.f32 %v401, %v632
        %v634 = vpop.f32.mrf.mxu0
        %635 = vmatprep.mubr.bf16.mxu0 0
        %636 = vmatmul.mubr.bf16.gmra.mxu0 %v474
        %v637 = vpop.f32.mrf.mxu0
        %v638 = vadd.f32 %v401, %v637
        %v639 = vpop.f32.mrf.mxu0
        %v640 = vpop.f32.mrf.mxu0
        %v641 = vadd.f32 %v401, %v640
        %v642 = vpop.f32.mrf.mxu0
        %643 = vmatprep.mubr.bf16.mxu0 0
        %644 = vmatmul.mubr.bf16.gmra.mxu0 %v475
        %v645 = vpop.f32.mrf.mxu0
        %v646 = vadd.f32 %v401, %v645
        %v647 = vpop.f32.mrf.mxu0
        %v648 = vpop.f32.mrf.mxu0
        %v649 = vadd.f32 %v401, %v648
        %v650 = vpop.f32.mrf.mxu0
        %651 = vmatprep.mubr.bf16.mxu0 0
        %652 = vmatmul.mubr.bf16.gmra.mxu0 %v476
        %v653 = vpop.f32.mrf.mxu0
        %v654 = vadd.f32 %v401, %v653
        %v655 = vpop.f32.mrf.mxu0
        %v656 = vpop.f32.mrf.mxu0
        %v657 = vadd.f32 %v401, %v656
        %v658 = vpop.f32.mrf.mxu0
        %659 = vmatprep.mubr.bf16.mxu0 0
        %660 = vmatmul.mubr.bf16.gmra.mxu0 %v477
        %v661 = vpop.f32.mrf.mxu0
        %v662 = vadd.f32 %v401, %v661
        %v663 = vpop.f32.mrf.mxu0
        %v664 = vpop.f32.mrf.mxu0
        %v665 = vadd.f32 %v401, %v664
        %v666 = vpop.f32.mrf.mxu0
        %667 = vmatprep.mubr.bf16.mxu0 0
        %668 = vmatmul.mubr.bf16.gmra.mxu0 %v478
        %v669 = vpop.f32.mrf.mxu0
        %v670 = vadd.f32 %v401, %v669
        %v671 = vpop.f32.mrf.mxu0
        %v672 = vpop.f32.mrf.mxu0
        %v673 = vadd.f32 %v401, %v672
        %v674 = vpop.f32.mrf.mxu0
        %675 = vmatprep.mubr.bf16.mxu0 0
        %676 = vmatmul.mubr.bf16.gmra.mxu0 %v479
        %v677 = vpop.f32.mrf.mxu0
        %v678 = vadd.f32 %v401, %v677
        %v679 = vpop.f32.mrf.mxu0
        %v680 = vpop.f32.mrf.mxu0
        %v681 = vadd.f32 %v401, %v680
        %v682 = vpop.f32.mrf.mxu0
        %683 = vmatprep.mubr.bf16.mxu0 0
        %684 = vmatmul.mubr.bf16.gmra.mxu0 %v480
        %v685 = vpop.f32.mrf.mxu0
        %v686 = vadd.f32 %v401, %v685
        %v687 = vpop.f32.mrf.mxu0
        %v688 = vpop.f32.mrf.mxu0
        %v689 = vadd.f32 %v401, %v688
        %v690 = vpop.f32.mrf.mxu0
        %691 = vmatprep.mubr.bf16.mxu0 0
        %692 = vmatmul.mubr.bf16.gmra.mxu0 %v481
        %v693 = vpop.f32.mrf.mxu0
        %v694 = vadd.f32 %v401, %v693
        %v695 = vpop.f32.mrf.mxu0
        %v696 = vpop.f32.mrf.mxu0
        %v697 = vadd.f32 %v401, %v696
        %v698 = vpop.f32.mrf.mxu0
        %699 = vmatprep.mubr.bf16.mxu0 0
        %700 = vmatmul.mubr.bf16.gmra.mxu0 %v482
        %v701 = vpop.f32.mrf.mxu0
        %v702 = vadd.f32 %v401, %v701
        %v703 = vpop.f32.mrf.mxu0
        %v704 = vpop.f32.mrf.mxu0
        %v705 = vadd.f32 %v401, %v704
        %v706 = vpop.f32.mrf.mxu0
        %707 = vdwg.mxu0
        %v708 = vpack.c.bf16 %v585, %v582
        %v709 = vpack.c.bf16 %v593, %v590
        %v710 = vpack.c.bf16 %v601, %v598
        %v711 = vpack.c.bf16 %v609, %v606
        %v712 = vpack.c.bf16 %v617, %v614
        %v713 = vpack.c.bf16 %v625, %v622
        %v714 = vpack.c.bf16 %v633, %v630
        %v715 = vpack.c.bf16 %v641, %v638
        %v716 = vpack.c.bf16 %v649, %v646
        %v717 = vpack.c.bf16 %v657, %v654
        %v718 = vpack.c.bf16 %v665, %v662
        %v719 = vpack.c.bf16 %v673, %v670
        %v720 = vpack.c.bf16 %v681, %v678
        %v721 = vpack.c.bf16 %v689, %v686
        %v722 = vpack.c.bf16 %v697, %v694
        %v723 = vpack.c.bf16 %v705, %v702
        %v724 = vmul.bf16 %v708, %v708
        %v725 = vmul.bf16 %v709, %v709
        %v726 = vmul.bf16 %v710, %v710
        %v727 = vmul.bf16 %v711, %v711
        %v728 = vmul.bf16 %v712, %v712
        %v729 = vmul.bf16 %v713, %v713
        %v730 = vmul.bf16 %v714, %v714
        %v731 = vmul.bf16 %v715, %v715
        %v732 = vmul.bf16 %v716, %v716
        %v733 = vmul.bf16 %v717, %v717
        %v734 = vmul.bf16 %v718, %v718
        %v735 = vmul.bf16 %v719, %v719
        %v736 = vmul.bf16 %v720, %v720
        %v737 = vmul.bf16 %v721, %v721
        %v738 = vmul.bf16 %v722, %v722
        %v739 = vmul.bf16 %v723, %v723
        %v740 = vmul.bf16 %v708, %v724
        %v741 = vmul.bf16 %v709, %v725
        %v742 = vmul.bf16 %v710, %v726
        %v743 = vmul.bf16 %v711, %v727
        %v744 = vmul.bf16 %v712, %v728
        %v745 = vmul.bf16 %v713, %v729
        %v746 = vmul.bf16 %v714, %v730
        %v747 = vmul.bf16 %v715, %v731
        %v748 = vmul.bf16 %v716, %v732
        %v749 = vmul.bf16 %v717, %v733
        %v750 = vmul.bf16 %v718, %v734
        %v751 = vmul.bf16 %v719, %v735
        %v752 = vmul.bf16 %v720, %v736
        %v753 = vmul.bf16 %v721, %v737
        %v754 = vmul.bf16 %v722, %v738
        %v755 = vmul.bf16 %v723, %v739
        %v756 = vmul.bf16 %v740, 1027030327
        %v757 = vmul.bf16 %v741, 1027030327
        %v758 = vmul.bf16 %v742, 1027030327
        %v759 = vmul.bf16 %v743, 1027030327
        %v760 = vmul.bf16 %v744, 1027030327
        %v761 = vmul.bf16 %v745, 1027030327
        %v762 = vmul.bf16 %v746, 1027030327
        %v763 = vmul.bf16 %v747, 1027030327
        %v764 = vmul.bf16 %v748, 1027030327
        %v765 = vmul.bf16 %v749, 1027030327
        %v766 = vmul.bf16 %v750, 1027030327
        %v767 = vmul.bf16 %v751, 1027030327
        %v768 = vmul.bf16 %v752, 1027030327
        %v769 = vmul.bf16 %v753, 1027030327
        %v770 = vmul.bf16 %v754, 1027030327
        %v771 = vmul.bf16 %v755, 1027030327
        %v772 = vadd.bf16 %v708, %v756
        %v773 = vadd.bf16 %v709, %v757
        %v774 = vadd.bf16 %v710, %v758
        %v775 = vadd.bf16 %v711, %v759
        %v776 = vadd.bf16 %v712, %v760
        %v777 = vadd.bf16 %v713, %v761
        %v778 = vadd.bf16 %v714, %v762
        %v779 = vadd.bf16 %v715, %v763
        %v780 = vadd.bf16 %v716, %v764
        %v781 = vadd.bf16 %v717, %v765
        %v782 = vadd.bf16 %v718, %v766
        %v783 = vadd.bf16 %v719, %v767
        %v784 = vadd.bf16 %v720, %v768
        %v785 = vadd.bf16 %v721, %v769
        %v786 = vadd.bf16 %v722, %v770
        %v787 = vadd.bf16 %v723, %v771
        %v788 = vmul.bf16 %v772, 1061961548
        %v789 = vmul.bf16 %v773, 1061961548
        %v790 = vmul.bf16 %v774, 1061961548
        %v791 = vmul.bf16 %v775, 1061961548
        %v792 = vmul.bf16 %v776, 1061961548
        %v793 = vmul.bf16 %v777, 1061961548
        %v794 = vmul.bf16 %v778, 1061961548
        %v795 = vmul.bf16 %v779, 1061961548
        %v796 = vmul.bf16 %v780, 1061961548
        %v797 = vmul.bf16 %v781, 1061961548
        %v798 = vmul.bf16 %v782, 1061961548
        %v799 = vmul.bf16 %v783, 1061961548
        %v800 = vmul.bf16 %v784, 1061961548
        %v801 = vmul.bf16 %v785, 1061961548
        %v802 = vmul.bf16 %v786, 1061961548
        %v803 = vmul.bf16 %v787, 1061961548
        %v804 = vtanh.bf16.pop %v788
        %v805 = vtanh.bf16.pop %v789
        %v806 = vtanh.bf16.pop %v790
        %v807 = vtanh.bf16.pop %v791
        %v808 = vtanh.bf16.pop %v792
        %v809 = vtanh.bf16.pop %v793
        %v810 = vtanh.bf16.pop %v794
        %v811 = vtanh.bf16.pop %v795
        %v812 = vtanh.bf16.pop %v796
        %v813 = vtanh.bf16.pop %v797
        %v814 = vtanh.bf16.pop %v798
        %v815 = vtanh.bf16.pop %v799
        %v816 = vtanh.bf16.pop %v800
        %v817 = vtanh.bf16.pop %v801
        %v818 = vtanh.bf16.pop %v802
        %v819 = vtanh.bf16.pop %v803
        %v820 = vadd.bf16 %v804, 1065369472
        %v821 = vadd.bf16 %v805, 1065369472
        %v822 = vadd.bf16 %v806, 1065369472
        %v823 = vadd.bf16 %v807, 1065369472
        %v824 = vadd.bf16 %v808, 1065369472
        %v825 = vadd.bf16 %v809, 1065369472
        %v826 = vadd.bf16 %v810, 1065369472
        %v827 = vadd.bf16 %v811, 1065369472
        %v828 = vadd.bf16 %v812, 1065369472
        %v829 = vadd.bf16 %v813, 1065369472
        %v830 = vadd.bf16 %v814, 1065369472
        %v831 = vadd.bf16 %v815, 1065369472
        %v832 = vadd.bf16 %v816, 1065369472
        %v833 = vadd.bf16 %v817, 1065369472
        %v834 = vadd.bf16 %v818, 1065369472
        %v835 = vadd.bf16 %v819, 1065369472
        %v836 = vmul.bf16 %v820, 1056980736
        %v837 = vmul.bf16 %v821, 1056980736
        %v838 = vmul.bf16 %v822, 1056980736
        %v839 = vmul.bf16 %v823, 1056980736
        %v840 = vmul.bf16 %v824, 1056980736
        %v841 = vmul.bf16 %v825, 1056980736
        %v842 = vmul.bf16 %v826, 1056980736
        %v843 = vmul.bf16 %v827, 1056980736
        %v844 = vmul.bf16 %v828, 1056980736
        %v845 = vmul.bf16 %v829, 1056980736
        %v846 = vmul.bf16 %v830, 1056980736
        %v847 = vmul.bf16 %v831, 1056980736
        %v848 = vmul.bf16 %v832, 1056980736
        %v849 = vmul.bf16 %v833, 1056980736
        %v850 = vmul.bf16 %v834, 1056980736
        %v851 = vmul.bf16 %v835, 1056980736
        %v852 = vmul.bf16 %v708, %v836
        %v853 = vmul.bf16 %v709, %v837
        %v854 = vmul.bf16 %v710, %v838
        %v855 = vmul.bf16 %v711, %v839
        %v856 = vmul.bf16 %v712, %v840
        %v857 = vmul.bf16 %v713, %v841
        %v858 = vmul.bf16 %v714, %v842
        %v859 = vmul.bf16 %v715, %v843
        %v860 = vmul.bf16 %v716, %v844
        %v861 = vmul.bf16 %v717, %v845
        %v862 = vmul.bf16 %v718, %v846
        %v863 = vmul.bf16 %v719, %v847
        %v864 = vmul.bf16 %v720, %v848
        %v865 = vmul.bf16 %v721, %v849
        %v866 = vmul.bf16 %v722, %v850
        %v867 = vmul.bf16 %v723, %v851
        %v868 = vld [vmem:[#allocation7] sm:$0xf]
        %v869 = vld [vmem:[#allocation7 + $0x4] sm:$0xf]
        %v870 = vld [vmem:[#allocation7 + $0x8] sm:$0xf]
        %v871 = vld [vmem:[#allocation7 + $0xc] sm:$0xf]
        %v872 = vld [vmem:[#allocation7 + $0x10] sm:$0xf]
        %v873 = vld [vmem:[#allocation7 + $0x14] sm:$0xf]
        %v874 = vld [vmem:[#allocation7 + $0x18] sm:$0xf]
        %v875 = vld [vmem:[#allocation7 + $0x1c] sm:$0xf]
        %v876 = vld [vmem:[#allocation7 + $0x20] sm:$0xf]
        %v877 = vld [vmem:[#allocation7 + $0x24] sm:$0xf]
        %v878 = vld [vmem:[#allocation7 + $0x28] sm:$0xf]
        %v879 = vld [vmem:[#allocation7 + $0x2c] sm:$0xf]
        %v880 = vld [vmem:[#allocation7 + $0x30] sm:$0xf]
        %v881 = vld [vmem:[#allocation7 + $0x34] sm:$0xf]
        %v882 = vld [vmem:[#allocation7 + $0x38] sm:$0xf]
        %v883 = vld [vmem:[#allocation7 + $0x3c] sm:$0xf]
        %v884 = vld [vmem:[%s4] sm:$0x1]
        %v886 = vlaneseq
        %v887 = vshrl.u32 %v886, 7
        %v888 = vsub.s32 0, %v887
        %v889 = vrot.slane %v884, %v888
        %v907 = vunpack.c.l.b16 %v868
        %v908 = vunpack.c.l.b16 %v869
        %v909 = vunpack.c.l.b16 %v870
        %v910 = vunpack.c.l.b16 %v871
        %v911 = vunpack.c.l.b16 %v872
        %v912 = vunpack.c.l.b16 %v873
        %v913 = vunpack.c.l.b16 %v874
        %v914 = vunpack.c.l.b16 %v875
        %v915 = vunpack.c.l.b16 %v876
        %v916 = vunpack.c.l.b16 %v877
        %v917 = vunpack.c.l.b16 %v878
        %v918 = vunpack.c.l.b16 %v879
        %v919 = vunpack.c.l.b16 %v880
        %v920 = vunpack.c.l.b16 %v881
        %v921 = vunpack.c.l.b16 %v882
        %v922 = vunpack.c.l.b16 %v883
        %v923 = vpack.c.b16 %v908, %v907
        %v924 = vpack.c.b16 %v910, %v909
        %v925 = vpack.c.b16 %v912, %v911
        %v926 = vpack.c.b16 %v914, %v913
        %v927 = vpack.c.b16 %v916, %v915
        %v928 = vpack.c.b16 %v918, %v917
        %v929 = vpack.c.b16 %v920, %v919
        %v930 = vpack.c.b16 %v922, %v921
        %939 = vmatprep.subr.bf16.mxu0 0
        %940 = vmatpush1.bf16.msra.mxu0 %v930
        %941 = vmatprep.subr.bf16.mxu0 0
        %942 = vmatpush1.bf16.msra.mxu0 %v929
        %943 = vmatprep.subr.bf16.mxu0 0
        %944 = vmatpush1.bf16.msra.mxu0 %v928
        %945 = vmatprep.subr.bf16.mxu0 0
        %946 = vmatpush1.bf16.msra.mxu0 %v927
        %947 = vmatprep.subr.bf16.mxu0 0
        %948 = vmatpush1.bf16.msra.mxu0 %v926
        %949 = vmatprep.subr.bf16.mxu0 0
        %950 = vmatpush1.bf16.msra.mxu0 %v925
        %951 = vmatprep.subr.bf16.mxu0 0
        %952 = vmatpush1.bf16.msra.mxu0 %v924
        %953 = vmatprep.subr.bf16.mxu0 0
        %954 = vmatpush1.bf16.msra.mxu0 %v923
        %955 = vmatprep.subr.bf16.mxu0 0
        %956 = vmatpush2.bf16.msra.mxu0 0
        %957 = vmatprep.subr.bf16.mxu0 0
        %958 = vmatpush2.bf16.msra.mxu0 0
        %959 = vmatprep.subr.bf16.mxu0 0
        %960 = vmatpush2.bf16.msra.mxu0 0
        %961 = vmatprep.subr.bf16.mxu0 0
        %962 = vmatpush2.bf16.msra.mxu0 0
        %963 = vmatprep.subr.bf16.mxu0 0
        %964 = vmatpush2.bf16.msra.mxu0 0
        %965 = vmatprep.subr.bf16.mxu0 0
        %966 = vmatpush2.bf16.msra.mxu0 0
        %967 = vmatprep.subr.bf16.mxu0 0
        %968 = vmatpush2.bf16.msra.mxu0 0
        %969 = vmatprep.subr.bf16.mxu0 0
        %970 = vmatpush2.bf16.msra.mxu0 0
        %971 = vmatprep.mubr.bf16.mxu0 0
        %972 = vmatmul.mubr.bf16.gmra.mxu0 %v852
        %v973 = vpop.f32.mrf.mxu0
        %v974 = vadd.f32 %v889, %v973
        %v975 = vpop.f32.mrf.mxu0
        %v976 = vpop.f32.mrf.mxu0
        %v977 = vadd.f32 %v889, %v976
        %v978 = vpop.f32.mrf.mxu0
        %979 = vmatprep.mubr.bf16.mxu0 0
        %980 = vmatmul.mubr.bf16.gmra.mxu0 %v853
        %v981 = vpop.f32.mrf.mxu0
        %v982 = vadd.f32 %v889, %v981
        %v983 = vpop.f32.mrf.mxu0
        %v984 = vpop.f32.mrf.mxu0
        %v985 = vadd.f32 %v889, %v984
        %v986 = vpop.f32.mrf.mxu0
        %987 = vmatprep.mubr.bf16.mxu0 0
        %988 = vmatmul.mubr.bf16.gmra.mxu0 %v854
        %v989 = vpop.f32.mrf.mxu0
        %v990 = vadd.f32 %v889, %v989
        %v991 = vpop.f32.mrf.mxu0
        %v992 = vpop.f32.mrf.mxu0
        %v993 = vadd.f32 %v889, %v992
        %v994 = vpop.f32.mrf.mxu0
        %995 = vmatprep.mubr.bf16.mxu0 0
        %996 = vmatmul.mubr.bf16.gmra.mxu0 %v855
        %v997 = vpop.f32.mrf.mxu0
        %v998 = vadd.f32 %v889, %v997
        %v999 = vpop.f32.mrf.mxu0
        %v1000 = vpop.f32.mrf.mxu0
        %v1001 = vadd.f32 %v889, %v1000
        %v1002 = vpop.f32.mrf.mxu0
        %1003 = vmatprep.mubr.bf16.mxu0 0
        %1004 = vmatmul.mubr.bf16.gmra.mxu0 %v856
        %v1005 = vpop.f32.mrf.mxu0
        %v1006 = vadd.f32 %v889, %v1005
        %v1007 = vpop.f32.mrf.mxu0
        %v1008 = vpop.f32.mrf.mxu0
        %v1009 = vadd.f32 %v889, %v1008
        %v1010 = vpop.f32.mrf.mxu0
        %1011 = vmatprep.mubr.bf16.mxu0 0
        %1012 = vmatmul.mubr.bf16.gmra.mxu0 %v857
        %v1013 = vpop.f32.mrf.mxu0
        %v1014 = vadd.f32 %v889, %v1013
        %v1015 = vpop.f32.mrf.mxu0
        %v1016 = vpop.f32.mrf.mxu0
        %v1017 = vadd.f32 %v889, %v1016
        %v1018 = vpop.f32.mrf.mxu0
        %1019 = vmatprep.mubr.bf16.mxu0 0
        %1020 = vmatmul.mubr.bf16.gmra.mxu0 %v858
        %v1021 = vpop.f32.mrf.mxu0
        %v1022 = vadd.f32 %v889, %v1021
        %v1023 = vpop.f32.mrf.mxu0
        %v1024 = vpop.f32.mrf.mxu0
        %v1025 = vadd.f32 %v889, %v1024
        %v1026 = vpop.f32.mrf.mxu0
        %1027 = vmatprep.mubr.bf16.mxu0 0
        %1028 = vmatmul.mubr.bf16.gmra.mxu0 %v859
        %v1029 = vpop.f32.mrf.mxu0
        %v1030 = vadd.f32 %v889, %v1029
        %v1031 = vpop.f32.mrf.mxu0
        %v1032 = vpop.f32.mrf.mxu0
        %v1033 = vadd.f32 %v889, %v1032
        %v1034 = vpop.f32.mrf.mxu0
        %1035 = vmatprep.mubr.bf16.mxu0 0
        %1036 = vmatmul.mubr.bf16.gmra.mxu0 %v860
        %v1037 = vpop.f32.mrf.mxu0
        %v1038 = vadd.f32 %v889, %v1037
        %v1039 = vpop.f32.mrf.mxu0
        %v1040 = vpop.f32.mrf.mxu0
        %v1041 = vadd.f32 %v889, %v1040
        %v1042 = vpop.f32.mrf.mxu0
        %1043 = vmatprep.mubr.bf16.mxu0 0
        %1044 = vmatmul.mubr.bf16.gmra.mxu0 %v861
        %v1045 = vpop.f32.mrf.mxu0
        %v1046 = vadd.f32 %v889, %v1045
        %v1047 = vpop.f32.mrf.mxu0
        %v1048 = vpop.f32.mrf.mxu0
        %v1049 = vadd.f32 %v889, %v1048
        %v1050 = vpop.f32.mrf.mxu0
        %1051 = vmatprep.mubr.bf16.mxu0 0
        %1052 = vmatmul.mubr.bf16.gmra.mxu0 %v862
        %v1053 = vpop.f32.mrf.mxu0
        %v1054 = vadd.f32 %v889, %v1053
        %v1055 = vpop.f32.mrf.mxu0
        %v1056 = vpop.f32.mrf.mxu0
        %v1057 = vadd.f32 %v889, %v1056
        %v1058 = vpop.f32.mrf.mxu0
        %1059 = vmatprep.mubr.bf16.mxu0 0
        %1060 = vmatmul.mubr.bf16.gmra.mxu0 %v863
        %v1061 = vpop.f32.mrf.mxu0
        %v1062 = vadd.f32 %v889, %v1061
        %v1063 = vpop.f32.mrf.mxu0
        %v1064 = vpop.f32.mrf.mxu0
        %v1065 = vadd.f32 %v889, %v1064
        %v1066 = vpop.f32.mrf.mxu0
        %1067 = vmatprep.mubr.bf16.mxu0 0
        %1068 = vmatmul.mubr.bf16.gmra.mxu0 %v864
        %v1069 = vpop.f32.mrf.mxu0
        %v1070 = vadd.f32 %v889, %v1069
        %v1071 = vpop.f32.mrf.mxu0
        %v1072 = vpop.f32.mrf.mxu0
        %v1073 = vadd.f32 %v889, %v1072
        %v1074 = vpop.f32.mrf.mxu0
        %1075 = vmatprep.mubr.bf16.mxu0 0
        %1076 = vmatmul.mubr.bf16.gmra.mxu0 %v865
        %v1077 = vpop.f32.mrf.mxu0
        %v1078 = vadd.f32 %v889, %v1077
        %v1079 = vpop.f32.mrf.mxu0
        %v1080 = vpop.f32.mrf.mxu0
        %v1081 = vadd.f32 %v889, %v1080
        %v1082 = vpop.f32.mrf.mxu0
        %1083 = vmatprep.mubr.bf16.mxu0 0
        %1084 = vmatmul.mubr.bf16.gmra.mxu0 %v866
        %v1085 = vpop.f32.mrf.mxu0
        %v1086 = vadd.f32 %v889, %v1085
        %v1087 = vpop.f32.mrf.mxu0
        %v1088 = vpop.f32.mrf.mxu0
        %v1089 = vadd.f32 %v889, %v1088
        %v1090 = vpop.f32.mrf.mxu0
        %1091 = vmatprep.mubr.bf16.mxu0 0
        %1092 = vmatmul.mubr.bf16.gmra.mxu0 %v867
        %v1093 = vpop.f32.mrf.mxu0
        %v1094 = vadd.f32 %v889, %v1093
        %v1095 = vpop.f32.mrf.mxu0
        %v1096 = vpop.f32.mrf.mxu0
        %v1097 = vadd.f32 %v889, %v1096
        %v1098 = vpop.f32.mrf.mxu0
        %1099 = vdwg.mxu0
        %v1100 = vpack.c.bf16 %v977, %v974
        %v1101 = vpack.c.bf16 %v985, %v982
        %v1102 = vpack.c.bf16 %v993, %v990
        %v1103 = vpack.c.bf16 %v1001, %v998
        %v1104 = vpack.c.bf16 %v1009, %v1006
        %v1105 = vpack.c.bf16 %v1017, %v1014
        %v1106 = vpack.c.bf16 %v1025, %v1022
        %v1107 = vpack.c.bf16 %v1033, %v1030
        %v1108 = vpack.c.bf16 %v1041, %v1038
        %v1109 = vpack.c.bf16 %v1049, %v1046
        %v1110 = vpack.c.bf16 %v1057, %v1054
        %v1111 = vpack.c.bf16 %v1065, %v1062
        %v1112 = vpack.c.bf16 %v1073, %v1070
        %v1113 = vpack.c.bf16 %v1081, %v1078
        %v1114 = vpack.c.bf16 %v1089, %v1086
        %v1115 = vpack.c.bf16 %v1097, %v1094
        %v1116 = vmul.bf16 %v1100, %v1100
        %v1117 = vmul.bf16 %v1101, %v1101
        %v1118 = vmul.bf16 %v1102, %v1102
        %v1119 = vmul.bf16 %v1103, %v1103
        %v1120 = vmul.bf16 %v1104, %v1104
        %v1121 = vmul.bf16 %v1105, %v1105
        %v1122 = vmul.bf16 %v1106, %v1106
        %v1123 = vmul.bf16 %v1107, %v1107
        %v1124 = vmul.bf16 %v1108, %v1108
        %v1125 = vmul.bf16 %v1109, %v1109
        %v1126 = vmul.bf16 %v1110, %v1110
        %v1127 = vmul.bf16 %v1111, %v1111
        %v1128 = vmul.bf16 %v1112, %v1112
        %v1129 = vmul.bf16 %v1113, %v1113
        %v1130 = vmul.bf16 %v1114, %v1114
        %v1131 = vmul.bf16 %v1115, %v1115
        %v1132 = vmul.bf16 %v1100, %v1116
        %v1133 = vmul.bf16 %v1101, %v1117
        %v1134 = vmul.bf16 %v1102, %v1118
        %v1135 = vmul.bf16 %v1103, %v1119
        %v1136 = vmul.bf16 %v1104, %v1120
        %v1137 = vmul.bf16 %v1105, %v1121
        %v1138 = vmul.bf16 %v1106, %v1122
        %v1139 = vmul.bf16 %v1107, %v1123
        %v1140 = vmul.bf16 %v1108, %v1124
        %v1141 = vmul.bf16 %v1109, %v1125
        %v1142 = vmul.bf16 %v1110, %v1126
        %v1143 = vmul.bf16 %v1111, %v1127
        %v1144 = vmul.bf16 %v1112, %v1128
        %v1145 = vmul.bf16 %v1113, %v1129
        %v1146 = vmul.bf16 %v1114, %v1130
        %v1147 = vmul.bf16 %v1115, %v1131
        %v1148 = vmul.bf16 %v1132, 1027030327
        %v1149 = vmul.bf16 %v1133, 1027030327
        %v1150 = vmul.bf16 %v1134, 1027030327
        %v1151 = vmul.bf16 %v1135, 1027030327
        %v1152 = vmul.bf16 %v1136, 1027030327
        %v1153 = vmul.bf16 %v1137, 1027030327
        %v1154 = vmul.bf16 %v1138, 1027030327
        %v1155 = vmul.bf16 %v1139, 1027030327
        %v1156 = vmul.bf16 %v1140, 1027030327
        %v1157 = vmul.bf16 %v1141, 1027030327
        %v1158 = vmul.bf16 %v1142, 1027030327
        %v1159 = vmul.bf16 %v1143, 1027030327
        %v1160 = vmul.bf16 %v1144, 1027030327
        %v1161 = vmul.bf16 %v1145, 1027030327
        %v1162 = vmul.bf16 %v1146, 1027030327
        %v1163 = vmul.bf16 %v1147, 1027030327
        %v1164 = vadd.bf16 %v1100, %v1148
        %v1165 = vadd.bf16 %v1101, %v1149
        %v1166 = vadd.bf16 %v1102, %v1150
        %v1167 = vadd.bf16 %v1103, %v1151
        %v1168 = vadd.bf16 %v1104, %v1152
        %v1169 = vadd.bf16 %v1105, %v1153
        %v1170 = vadd.bf16 %v1106, %v1154
        %v1171 = vadd.bf16 %v1107, %v1155
        %v1172 = vadd.bf16 %v1108, %v1156
        %v1173 = vadd.bf16 %v1109, %v1157
        %v1174 = vadd.bf16 %v1110, %v1158
        %v1175 = vadd.bf16 %v1111, %v1159
        %v1176 = vadd.bf16 %v1112, %v1160
        %v1177 = vadd.bf16 %v1113, %v1161
        %v1178 = vadd.bf16 %v1114, %v1162
        %v1179 = vadd.bf16 %v1115, %v1163
        %v1180 = vmul.bf16 %v1164, 1061961548
        %v1181 = vmul.bf16 %v1165, 1061961548
        %v1182 = vmul.bf16 %v1166, 1061961548
        %v1183 = vmul.bf16 %v1167, 1061961548
        %v1184 = vmul.bf16 %v1168, 1061961548
        %v1185 = vmul.bf16 %v1169, 1061961548
        %v1186 = vmul.bf16 %v1170, 1061961548
        %v1187 = vmul.bf16 %v1171, 1061961548
        %v1188 = vmul.bf16 %v1172, 1061961548
        %v1189 = vmul.bf16 %v1173, 1061961548
        %v1190 = vmul.bf16 %v1174, 1061961548
        %v1191 = vmul.bf16 %v1175, 1061961548
        %v1192 = vmul.bf16 %v1176, 1061961548
        %v1193 = vmul.bf16 %v1177, 1061961548
        %v1194 = vmul.bf16 %v1178, 1061961548
        %v1195 = vmul.bf16 %v1179, 1061961548
        %v1196 = vtanh.bf16.pop %v1180
        %v1197 = vtanh.bf16.pop %v1181
        %v1198 = vtanh.bf16.pop %v1182
        %v1199 = vtanh.bf16.pop %v1183
        %v1200 = vtanh.bf16.pop %v1184
        %v1201 = vtanh.bf16.pop %v1185
        %v1202 = vtanh.bf16.pop %v1186
        %v1203 = vtanh.bf16.pop %v1187
        %v1204 = vtanh.bf16.pop %v1188
        %v1205 = vtanh.bf16.pop %v1189
        %v1206 = vtanh.bf16.pop %v1190
        %v1207 = vtanh.bf16.pop %v1191
        %v1208 = vtanh.bf16.pop %v1192
        %v1209 = vtanh.bf16.pop %v1193
        %v1210 = vtanh.bf16.pop %v1194
        %v1211 = vtanh.bf16.pop %v1195
        %v1212 = vadd.bf16 %v1196, 1065369472
        %v1213 = vadd.bf16 %v1197, 1065369472
        %v1214 = vadd.bf16 %v1198, 1065369472
        %v1215 = vadd.bf16 %v1199, 1065369472
        %v1216 = vadd.bf16 %v1200, 1065369472
        %v1217 = vadd.bf16 %v1201, 1065369472
        %v1218 = vadd.bf16 %v1202, 1065369472
        %v1219 = vadd.bf16 %v1203, 1065369472
        %v1220 = vadd.bf16 %v1204, 1065369472
        %v1221 = vadd.bf16 %v1205, 1065369472
        %v1222 = vadd.bf16 %v1206, 1065369472
        %v1223 = vadd.bf16 %v1207, 1065369472
        %v1224 = vadd.bf16 %v1208, 1065369472
        %v1225 = vadd.bf16 %v1209, 1065369472
        %v1226 = vadd.bf16 %v1210, 1065369472
        %v1227 = vadd.bf16 %v1211, 1065369472
        %v1228 = vmul.bf16 %v1212, 1056980736
        %v1229 = vmul.bf16 %v1213, 1056980736
        %v1230 = vmul.bf16 %v1214, 1056980736
        %v1231 = vmul.bf16 %v1215, 1056980736
        %v1232 = vmul.bf16 %v1216, 1056980736
        %v1233 = vmul.bf16 %v1217, 1056980736
        %v1234 = vmul.bf16 %v1218, 1056980736
        %v1235 = vmul.bf16 %v1219, 1056980736
        %v1236 = vmul.bf16 %v1220, 1056980736
        %v1237 = vmul.bf16 %v1221, 1056980736
        %v1238 = vmul.bf16 %v1222, 1056980736
        %v1239 = vmul.bf16 %v1223, 1056980736
        %v1240 = vmul.bf16 %v1224, 1056980736
        %v1241 = vmul.bf16 %v1225, 1056980736
        %v1242 = vmul.bf16 %v1226, 1056980736
        %v1243 = vmul.bf16 %v1227, 1056980736
        %v1244 = vmul.bf16 %v1100, %v1228
        %v1245 = vmul.bf16 %v1101, %v1229
        %v1246 = vmul.bf16 %v1102, %v1230
        %v1247 = vmul.bf16 %v1103, %v1231
        %v1248 = vmul.bf16 %v1104, %v1232
        %v1249 = vmul.bf16 %v1105, %v1233
        %v1250 = vmul.bf16 %v1106, %v1234
        %v1251 = vmul.bf16 %v1107, %v1235
        %v1252 = vmul.bf16 %v1108, %v1236
        %v1253 = vmul.bf16 %v1109, %v1237
        %v1254 = vmul.bf16 %v1110, %v1238
        %v1255 = vmul.bf16 %v1111, %v1239
        %v1256 = vmul.bf16 %v1112, %v1240
        %v1257 = vmul.bf16 %v1113, %v1241
        %v1258 = vmul.bf16 %v1114, %v1242
        %v1259 = vmul.bf16 %v1115, %v1243
        %v1260 = vld [vmem:[#allocation8] sm:$0xf]
        %v1261 = vld [vmem:[#allocation8 + $0x4] sm:$0xf]
        %v1262 = vld [vmem:[#allocation8 + $0x8] sm:$0xf]
        %v1263 = vld [vmem:[#allocation8 + $0xc] sm:$0xf]
        %v1264 = vld [vmem:[#allocation8 + $0x10] sm:$0xf]
        %v1265 = vld [vmem:[#allocation8 + $0x14] sm:$0xf]
        %v1266 = vld [vmem:[#allocation8 + $0x18] sm:$0xf]
        %v1267 = vld [vmem:[#allocation8 + $0x1c] sm:$0xf]
        %v1268 = vld [vmem:[#allocation8 + $0x20] sm:$0xf]
        %v1269 = vld [vmem:[#allocation8 + $0x24] sm:$0xf]
        %v1270 = vld [vmem:[#allocation8 + $0x28] sm:$0xf]
        %v1271 = vld [vmem:[#allocation8 + $0x2c] sm:$0xf]
        %v1272 = vld [vmem:[#allocation8 + $0x30] sm:$0xf]
        %v1273 = vld [vmem:[#allocation8 + $0x34] sm:$0xf]
        %v1274 = vld [vmem:[#allocation8 + $0x38] sm:$0xf]
        %v1275 = vld [vmem:[#allocation8 + $0x3c] sm:$0xf]
        %v1276 = vld [vmem:[%s6] sm:$0x1]
        %v1278 = vlaneseq
        %v1279 = vshrl.u32 %v1278, 7
        %v1280 = vsub.s32 0, %v1279
        %v1281 = vrot.slane %v1276, %v1280
        %v1299 = vunpack.c.l.b16 %v1260
        %v1300 = vunpack.c.l.b16 %v1261
        %v1301 = vunpack.c.l.b16 %v1262
        %v1302 = vunpack.c.l.b16 %v1263
        %v1303 = vunpack.c.l.b16 %v1264
        %v1304 = vunpack.c.l.b16 %v1265
        %v1305 = vunpack.c.l.b16 %v1266
        %v1306 = vunpack.c.l.b16 %v1267
        %v1307 = vunpack.c.l.b16 %v1268
        %v1308 = vunpack.c.l.b16 %v1269
        %v1309 = vunpack.c.l.b16 %v1270
        %v1310 = vunpack.c.l.b16 %v1271
        %v1311 = vunpack.c.l.b16 %v1272
        %v1312 = vunpack.c.l.b16 %v1273
        %v1313 = vunpack.c.l.b16 %v1274
        %v1314 = vunpack.c.l.b16 %v1275
        %v1315 = vpack.c.b16 %v1300, %v1299
        %v1316 = vpack.c.b16 %v1302, %v1301
        %v1317 = vpack.c.b16 %v1304, %v1303
        %v1318 = vpack.c.b16 %v1306, %v1305
        %v1319 = vpack.c.b16 %v1308, %v1307
        %v1320 = vpack.c.b16 %v1310, %v1309
        %v1321 = vpack.c.b16 %v1312, %v1311
        %v1322 = vpack.c.b16 %v1314, %v1313
        %1331 = vmatprep.subr.bf16.mxu0 0
        %1332 = vmatpush1.bf16.msra.mxu0 %v1322
        %1333 = vmatprep.subr.bf16.mxu0 0
        %1334 = vmatpush1.bf16.msra.mxu0 %v1321
        %1335 = vmatprep.subr.bf16.mxu0 0
        %1336 = vmatpush1.bf16.msra.mxu0 %v1320
        %1337 = vmatprep.subr.bf16.mxu0 0
        %1338 = vmatpush1.bf16.msra.mxu0 %v1319
        %1339 = vmatprep.subr.bf16.mxu0 0
        %1340 = vmatpush1.bf16.msra.mxu0 %v1318
        %1341 = vmatprep.subr.bf16.mxu0 0
        %1342 = vmatpush1.bf16.msra.mxu0 %v1317
        %1343 = vmatprep.subr.bf16.mxu0 0
        %1344 = vmatpush1.bf16.msra.mxu0 %v1316
        %1345 = vmatprep.subr.bf16.mxu0 0
        %1346 = vmatpush1.bf16.msra.mxu0 %v1315
        %1347 = vmatprep.subr.bf16.mxu0 0
        %1348 = vmatpush2.bf16.msra.mxu0 0
        %1349 = vmatprep.subr.bf16.mxu0 0
        %1350 = vmatpush2.bf16.msra.mxu0 0
        %1351 = vmatprep.subr.bf16.mxu0 0
        %1352 = vmatpush2.bf16.msra.mxu0 0
        %1353 = vmatprep.subr.bf16.mxu0 0
        %1354 = vmatpush2.bf16.msra.mxu0 0
        %1355 = vmatprep.subr.bf16.mxu0 0
        %1356 = vmatpush2.bf16.msra.mxu0 0
        %1357 = vmatprep.subr.bf16.mxu0 0
        %1358 = vmatpush2.bf16.msra.mxu0 0
        %1359 = vmatprep.subr.bf16.mxu0 0
        %1360 = vmatpush2.bf16.msra.mxu0 0
        %1361 = vmatprep.subr.bf16.mxu0 0
        %1362 = vmatpush2.bf16.msra.mxu0 0
        %1363 = vmatprep.mubr.bf16.mxu0 0
        %1364 = vmatmul.mubr.bf16.gmra.mxu0 %v1244
        %v1365 = vpop.f32.mrf.mxu0
        %v1366 = vadd.f32 %v1281, %v1365
        %v1367 = vpop.f32.mrf.mxu0
        %v1368 = vpop.f32.mrf.mxu0
        %v1369 = vadd.f32 %v1281, %v1368
        %v1370 = vpop.f32.mrf.mxu0
        %1371 = vmatprep.mubr.bf16.mxu0 0
        %1372 = vmatmul.mubr.bf16.gmra.mxu0 %v1245
        %v1373 = vpop.f32.mrf.mxu0
        %v1374 = vadd.f32 %v1281, %v1373
        %v1375 = vpop.f32.mrf.mxu0
        %v1376 = vpop.f32.mrf.mxu0
        %v1377 = vadd.f32 %v1281, %v1376
        %v1378 = vpop.f32.mrf.mxu0
        %1379 = vmatprep.mubr.bf16.mxu0 0
        %1380 = vmatmul.mubr.bf16.gmra.mxu0 %v1246
        %v1381 = vpop.f32.mrf.mxu0
        %v1382 = vadd.f32 %v1281, %v1381
        %v1383 = vpop.f32.mrf.mxu0
        %v1384 = vpop.f32.mrf.mxu0
        %v1385 = vadd.f32 %v1281, %v1384
        %v1386 = vpop.f32.mrf.mxu0
        %1387 = vmatprep.mubr.bf16.mxu0 0
        %1388 = vmatmul.mubr.bf16.gmra.mxu0 %v1247
        %v1389 = vpop.f32.mrf.mxu0
        %v1390 = vadd.f32 %v1281, %v1389
        %v1391 = vpop.f32.mrf.mxu0
        %v1392 = vpop.f32.mrf.mxu0
        %v1393 = vadd.f32 %v1281, %v1392
        %v1394 = vpop.f32.mrf.mxu0
        %1395 = vmatprep.mubr.bf16.mxu0 0
        %1396 = vmatmul.mubr.bf16.gmra.mxu0 %v1248
        %v1397 = vpop.f32.mrf.mxu0
        %v1398 = vadd.f32 %v1281, %v1397
        %v1399 = vpop.f32.mrf.mxu0
        %v1400 = vpop.f32.mrf.mxu0
        %v1401 = vadd.f32 %v1281, %v1400
        %v1402 = vpop.f32.mrf.mxu0
        %1403 = vmatprep.mubr.bf16.mxu0 0
        %1404 = vmatmul.mubr.bf16.gmra.mxu0 %v1249
        %v1405 = vpop.f32.mrf.mxu0
        %v1406 = vadd.f32 %v1281, %v1405
        %v1407 = vpop.f32.mrf.mxu0
        %v1408 = vpop.f32.mrf.mxu0
        %v1409 = vadd.f32 %v1281, %v1408
        %v1410 = vpop.f32.mrf.mxu0
        %1411 = vmatprep.mubr.bf16.mxu0 0
        %1412 = vmatmul.mubr.bf16.gmra.mxu0 %v1250
        %v1413 = vpop.f32.mrf.mxu0
        %v1414 = vadd.f32 %v1281, %v1413
        %v1415 = vpop.f32.mrf.mxu0
        %v1416 = vpop.f32.mrf.mxu0
        %v1417 = vadd.f32 %v1281, %v1416
        %v1418 = vpop.f32.mrf.mxu0
        %1419 = vmatprep.mubr.bf16.mxu0 0
        %1420 = vmatmul.mubr.bf16.gmra.mxu0 %v1251
        %v1421 = vpop.f32.mrf.mxu0
        %v1422 = vadd.f32 %v1281, %v1421
        %v1423 = vpop.f32.mrf.mxu0
        %v1424 = vpop.f32.mrf.mxu0
        %v1425 = vadd.f32 %v1281, %v1424
        %v1426 = vpop.f32.mrf.mxu0
        %1427 = vmatprep.mubr.bf16.mxu0 0
        %1428 = vmatmul.mubr.bf16.gmra.mxu0 %v1252
        %v1429 = vpop.f32.mrf.mxu0
        %v1430 = vadd.f32 %v1281, %v1429
        %v1431 = vpop.f32.mrf.mxu0
        %v1432 = vpop.f32.mrf.mxu0
        %v1433 = vadd.f32 %v1281, %v1432
        %v1434 = vpop.f32.mrf.mxu0
        %1435 = vmatprep.mubr.bf16.mxu0 0
        %1436 = vmatmul.mubr.bf16.gmra.mxu0 %v1253
        %v1437 = vpop.f32.mrf.mxu0
        %v1438 = vadd.f32 %v1281, %v1437
        %v1439 = vpop.f32.mrf.mxu0
        %v1440 = vpop.f32.mrf.mxu0
        %v1441 = vadd.f32 %v1281, %v1440
        %v1442 = vpop.f32.mrf.mxu0
        %1443 = vmatprep.mubr.bf16.mxu0 0
        %1444 = vmatmul.mubr.bf16.gmra.mxu0 %v1254
        %v1445 = vpop.f32.mrf.mxu0
        %v1446 = vadd.f32 %v1281, %v1445
        %v1447 = vpop.f32.mrf.mxu0
        %v1448 = vpop.f32.mrf.mxu0
        %v1449 = vadd.f32 %v1281, %v1448
        %v1450 = vpop.f32.mrf.mxu0
        %1451 = vmatprep.mubr.bf16.mxu0 0
        %1452 = vmatmul.mubr.bf16.gmra.mxu0 %v1255
        %v1453 = vpop.f32.mrf.mxu0
        %v1454 = vadd.f32 %v1281, %v1453
        %v1455 = vpop.f32.mrf.mxu0
        %v1456 = vpop.f32.mrf.mxu0
        %v1457 = vadd.f32 %v1281, %v1456
        %v1458 = vpop.f32.mrf.mxu0
        %1459 = vmatprep.mubr.bf16.mxu0 0
        %1460 = vmatmul.mubr.bf16.gmra.mxu0 %v1256
        %v1461 = vpop.f32.mrf.mxu0
        %v1462 = vadd.f32 %v1281, %v1461
        %v1463 = vpop.f32.mrf.mxu0
        %v1464 = vpop.f32.mrf.mxu0
        %v1465 = vadd.f32 %v1281, %v1464
        %v1466 = vpop.f32.mrf.mxu0
        %1467 = vmatprep.mubr.bf16.mxu0 0
        %1468 = vmatmul.mubr.bf16.gmra.mxu0 %v1257
        %v1469 = vpop.f32.mrf.mxu0
        %v1470 = vadd.f32 %v1281, %v1469
        %v1471 = vpop.f32.mrf.mxu0
        %v1472 = vpop.f32.mrf.mxu0
        %v1473 = vadd.f32 %v1281, %v1472
        %v1474 = vpop.f32.mrf.mxu0
        %1475 = vmatprep.mubr.bf16.mxu0 0
        %1476 = vmatmul.mubr.bf16.gmra.mxu0 %v1258
        %v1477 = vpop.f32.mrf.mxu0
        %v1478 = vadd.f32 %v1281, %v1477
        %v1479 = vpop.f32.mrf.mxu0
        %v1480 = vpop.f32.mrf.mxu0
        %v1481 = vadd.f32 %v1281, %v1480
        %v1482 = vpop.f32.mrf.mxu0
        %1483 = vmatprep.mubr.bf16.mxu0 0
        %1484 = vmatmul.mubr.bf16.gmra.mxu0 %v1259
        %v1485 = vpop.f32.mrf.mxu0
        %v1486 = vadd.f32 %v1281, %v1485
        %v1487 = vpop.f32.mrf.mxu0
        %v1488 = vpop.f32.mrf.mxu0
        %v1489 = vadd.f32 %v1281, %v1488
        %v1490 = vpop.f32.mrf.mxu0
        %1491 = vdwg.mxu0
        %1492 = vst [vmem:[%s340] sm:$0xff] %v1366
        %1493 = vst [vmem:[%s340 + $0x8] sm:$0xff] %v1369
        %1494 = vst [vmem:[%s340 + $0x10] sm:$0xff] %v1374
        %1495 = vst [vmem:[%s340 + $0x18] sm:$0xff] %v1377
        %1496 = vst [vmem:[%s340 + $0x20] sm:$0xff] %v1382
        %1497 = vst [vmem:[%s340 + $0x28] sm:$0xff] %v1385
        %1498 = vst [vmem:[%s340 + $0x30] sm:$0xff] %v1390
        %1499 = vst [vmem:[%s340 + $0x38] sm:$0xff] %v1393
        %1500 = vst [vmem:[%s340 + $0x40] sm:$0xff] %v1398
        %1501 = vst [vmem:[%s340 + $0x48] sm:$0xff] %v1401
        %1502 = vst [vmem:[%s340 + $0x50] sm:$0xff] %v1406
        %1503 = vst [vmem:[%s340 + $0x58] sm:$0xff] %v1409
        %1504 = vst [vmem:[%s340 + $0x60] sm:$0xff] %v1414
        %1505 = vst [vmem:[%s340 + $0x68] sm:$0xff] %v1417
        %1506 = vst [vmem:[%s340 + $0x70] sm:$0xff] %v1422
        %1507 = vst [vmem:[%s340 + $0x78] sm:$0xff] %v1425
        %1508 = vst [vmem:[%s340 + $0x80] sm:$0xff] %v1430
        %1509 = vst [vmem:[%s340 + $0x88] sm:$0xff] %v1433
        %1510 = vst [vmem:[%s340 + $0x90] sm:$0xff] %v1438
        %1511 = vst [vmem:[%s340 + $0x98] sm:$0xff] %v1441
        %1512 = vst [vmem:[%s340 + $0xa0] sm:$0xff] %v1446
        %1513 = vst [vmem:[%s340 + $0xa8] sm:$0xff] %v1449
        %1514 = vst [vmem:[%s340 + $0xb0] sm:$0xff] %v1454
        %1515 = vst [vmem:[%s340 + $0xb8] sm:$0xff] %v1457
        %1516 = vst [vmem:[%s340 + $0xc0] sm:$0xff] %v1462
        %1517 = vst [vmem:[%s340 + $0xc8] sm:$0xff] %v1465
        %1518 = vst [vmem:[%s340 + $0xd0] sm:$0xff] %v1470
        %1519 = vst [vmem:[%s340 + $0xd8] sm:$0xff] %v1473
        %1520 = vst [vmem:[%s340 + $0xe0] sm:$0xff] %v1478
        %1521 = vst [vmem:[%s340 + $0xe8] sm:$0xff] %v1481
        %1522 = vst [vmem:[%s340 + $0xf0] sm:$0xff] %v1486
        %1523 = vst [vmem:[%s340 + $0xf8] sm:$0xff] %v1489
        %s1524 = sand.u32 %s186, 1
        %s1525 = scalar_lea.sflag [#allocation4], %s1524
        %s1526 = sand.u32 %s186, 1
        %s1527 = smul.addr %s1526, 256
        %s1528 = scalar_lea.vmem [#allocation10], %s1527
        // Predicated region
        $region65: #{tpu_custom_call.1} parent=47 // pred_check
          %p1529 = pneg %p196
        $region66: #{tpu_custom_call.1} parent=47 // pred_check_branch
          %1531 = sbr.rel (%p1529) target = $region68
        $region67: #{tpu_custom_call.1} parent=47 // pred_region
          %s1532 = smul.u32 32, %s26
          %s1534 = ssub.s32 4096, 4096
          %1535 = vsyncadd %s1525, %s1534
          %s1536 = smul.addr %s1532, 128
          %s1537 = scalar_lea.hbm %s7, %s1536
          %s1538 = sshll.u32 %s1528, 4
          %s1539 = int_to_ptr.vmem [resolvable:$true] %s1538
          %1544 = dma.vmem_to_hbm [thread:$0]  %s1539, 4096, %s1537, %s1525, 128, 128, 8
        $region68: #{tpu_custom_call.1} parent=47 // pred_fallthru
          _
      $region48: #{tpu_custom_call.1} parent=5 // pred_fallthru
        _
      %p1545 = scmp.le.s32.totalorder 2, %s21
      // Predicated region
      $region69: #{tpu_custom_call.1} parent=5 // pred_check
        %p1546 = pneg %p1545
      $region70: #{tpu_custom_call.1} parent=5 // pred_check_branch
        %1548 = sbr.rel (%p1546) target = $region72
      $region71: #{tpu_custom_call.1} parent=5 // pred_region
        %s1549 = ssub.s32 %s21, 2
        // Predicated region
        $region73: #{tpu_custom_call.1} parent=71 // pred_check
          %p1550 = pneg %p202
        $region74: #{tpu_custom_call.1} parent=71 // pred_check_branch
          %1552 = sbr.rel (%p1550) target = $region76
        $region75: #{tpu_custom_call.1} parent=71 // pred_region
          %s1553 = sand.u32 %s187, 1
          %s1554 = scalar_lea.sflag [#allocation4], %s1553
          %s1555 = sand.u32 %s187, 1
          %s1556 = smul.addr %s1555, 256
          %s1557 = scalar_lea.vmem [#allocation10], %s1556
          %1558 = dma.done %s1554, 4096
        $region76: #{tpu_custom_call.1} parent=71 // pred_fallthru
          _
      $region72: #{tpu_custom_call.1} parent=5 // pred_fallthru
        _
    $region6: #{tpu_custom_call.1} parent=1 // loop_footer
      %s25 = sadd.s32 1, %s21
    $region7: #{tpu_custom_call.1} parent=1 // loop_footer_branch
      %20 = sbr.rel target = $region3
    $region8: #{tpu_custom_call.1} parent=1 // loop_exit
      _
    %1559 = vsyncpa [#allocation3], 1
    %s1560 = scalar_lea.sflag [#allocation3], 1
    %1561 = vsyncpa %s1560, 1
    %1562 = vsyncpa [#allocation6], 1
    %1563 = vsyncpa [#allocation9], 1
    %1564 = vsyncpa [#allocation4], 1
    %s1565 = scalar_lea.sflag [#allocation4], 1
    %1566 = vsyncpa %s1565, 1

</llo_original>
